<compile_context>
chip_gen: v7x
topology: tpu7x:2x2x1
jax: 0.10.0
libtpu: 0.0.40
codegen_flags: <defaults>
</compile_context>

<pallas_src>
import functools

import jax
import jax.numpy as jnp
from jax.experimental import pallas as pl
from jax.experimental.pallas import tpu as pltpu


def _sep_maxpool(a, halo_in, r, H, W):
    """Separable (2r+1)x(2r+1) stride-1 max over a = (C, H+2*halo_in, W+2*halo_in).

    Returns (C, H+2*halo_out, W+2*halo_out) with halo_out = halo_in - r.
    All slices are static; row pass then column pass (VPU maxima only).
    """
    halo_out = halo_in - r
    Ho = H + 2 * halo_out
    Wo = W + 2 * halo_out
    rowm = a[:, 0:Ho, :]
    for d in range(1, 2 * r + 1):
        rowm = jnp.maximum(rowm, a[:, d:d + Ho, :])
    out = rowm[:, :, 0:Wo]
    for d in range(1, 2 * r + 1):
        out = jnp.maximum(out, rowm[:, :, d:d + Wo])
    return out


def spp_kernel(x_ref, w_ref, shift_ref, o_ref, xpad_ref, *kcat,
               pool_sizes, H, W, pmax, single_dot):
    """One grid step = one (batch, channel-tile) pair.

    x_ref    : (TC, H, W)             input channel tile (batch dim squeezed)
    w_ref    : single_dot: (Cout, (1+P)*TC)  BN-folded 1x1 weight
               else      : (1+P, Cout, TC)   per-branch BN-folded weight slabs
    shift_ref: (Cout, 1)              folded BN shift = beta - mean*gamma/sqrt(var+eps)
    o_ref    : (Cout, H*W)            output tile, accumulated over channel tiles
    xpad_ref : (TC, H+2*pmax, W+2*pmax)  VMEM scratch: -inf padded channel tile
    kcat     : optional ((1+P)*TC, H*W)  VMEM scratch for the single fat-K dot path
    """
    c = pl.program_id(1)
    TC = x_ref.shape[0]
    HW = H * W
    kcat_ref = kcat[0] if single_dot else None

    @pl.when(c == 0)
    def _init():
        o_ref[...] = jnp.zeros_like(o_ref)

    # ---- -inf "same" padding done in VMEM (never materialized in HBM) -------------
    xpad_ref[...] = jnp.full(xpad_ref.shape, -jnp.inf, jnp.float32)
    xpad_ref[:, pmax:pmax + H, pmax:pmax + W] = x_ref[...]
    xp = xpad_ref[...]

    # ---- branch 0: identity (taken straight from the unpadded tile) ---------------
    x_flat = x_ref[...].reshape(TC, HW)
    if single_dot:
        kcat_ref[0:TC, :] = x_flat
        acc = None
    else:
        acc = jnp.dot(w_ref[0], x_flat, preferred_element_type=jnp.float32)

    # ---- pooling branches: cascaded stride-1 max pools, fused into the matmul -----
    prev_val, prev_size, prev_halo = None, 1, pmax
    for p, s in enumerate(pool_sizes, start=1):
        if prev_val is not None and s > prev_size and (s - prev_size) % 2 == 0:
            # cascade: max_s(x) == max_{s-prev+1}(max_prev(x))  (exact for stride 1)
            src, src_halo, r = prev_val, prev_halo, (s - prev_size) // 2
        else:
            src, src_halo, r = xp, pmax, s // 2
        halo = src_halo - r
        pooled = _sep_maxpool(src, src_halo, r, H, W)
        prev_val, prev_size, prev_halo = pooled, s, halo
        crop = pooled[:, halo:halo + H, halo:halo + W].reshape(TC, HW)
        if single_dot:
            kcat_ref[p * TC:(p + 1) * TC, :] = crop
        else:
            acc = acc + jnp.dot(w_ref[p], crop, preferred_element_type=jnp.float32)

    if single_dot:
        acc = jnp.dot(w_ref[...], kcat_ref[...], preferred_element_type=jnp.float32)

    o_ref[...] += acc

    # ---- last channel tile: folded-BN shift + swish --------------------------------
    @pl.when(c == pl.num_programs(1) - 1)
    def _finalize():
        y = o_ref[...] + shift_ref[...]
        o_ref[...] = y * jax.nn.sigmoid(y)


def spp_forward(x, w_conv, gamma, beta, mean, var, pool_sizes, eps=1e-5, c_tile=None):
    """SPP forward, NCHW in / NCHW out.

    x      : (N, C, H, W) float32
    w_conv : (Cout, (1+P)*C, 1, 1) 1x1 conv weight of the ConvBNLayer (bias=False)
    gamma, beta, mean, var : (Cout,) BatchNorm2d parameters (inference / running stats)
    """
    N, C, H, W = x.shape
    P = len(pool_sizes)
    assert P >= 1
    ccat = C * (1 + P)
    cout = w_conv.shape[0]
    assert w_conv.shape == (cout, ccat, 1, 1), w_conv.shape
    # stride-1 + pad=s//2 keeps the spatial size only for odd pool sizes
    assert all(s % 2 == 1 for s in pool_sizes), pool_sizes
    pmax = max(s // 2 for s in pool_sizes)

    x = x.astype(jnp.float32)

    # ---- fold inference BN into the 1x1 conv weight --------------------------------
    scale = gamma.astype(jnp.float32) / jnp.sqrt(var.astype(jnp.float32) + eps)
    w2 = w_conv.reshape(cout, ccat).astype(jnp.float32) * scale[:, None]
    shift = (beta.astype(jnp.float32) - mean.astype(jnp.float32) * scale).reshape(cout, 1)

    # ---- channel tiling (reduction axis of the 1x1 conv; bounds VMEM per step) -----
    if c_tile is None:
        if C <= 256:
            c_tile = C
        elif C % 256 == 0:
            c_tile = 256
        elif C % 128 == 0:
            c_tile = 128
        else:
            c_tile = C
    assert C % c_tile == 0, (C, c_tile)
    n_c = C // c_tile

    single_dot = (n_c == 1) and (ccat <= 128)

    if single_dot:
        w_arg = w2                                                  # (Cout, Ccat)
        w_spec = pl.BlockSpec((cout, ccat), lambda b, c: (0, 0))
    else:
        # (Cout, Ccat) -> (1+P, Cout, C): one BN-folded slab per concat branch.
        w_arg = jnp.transpose(w2.reshape(cout, 1 + P, C), (1, 0, 2))
        w_spec = pl.BlockSpec((1 + P, cout, c_tile), lambda b, c: (0, 0, c))

    HW = H * W
    kern = functools.partial(
        spp_kernel, pool_sizes=tuple(int(s) for s in pool_sizes),
        H=H, W=W, pmax=pmax, single_dot=single_dot)

    scratch = [pltpu.VMEM((c_tile, H + 2 * pmax, W + 2 * pmax), jnp.float32)]
    if single_dot:
        scratch.append(pltpu.VMEM((ccat, HW), jnp.float32))

    cost = pl.CostEstimate(
        flops=int(2 * N * HW * ccat * cout + 2 * N * C * HW * (max(pool_sizes) - 1)),
        transcendentals=int(N * cout * HW),
        bytes_accessed=int(4 * (x.size + w2.size + N * cout * HW + cout)),
    )

    out = pl.pallas_call(
        kern,
        out_shape=jax.ShapeDtypeStruct((N, cout, HW), jnp.float32),
        grid=(N, n_c),
        in_specs=[
            pl.BlockSpec((None, c_tile, H, W), lambda b, c: (b, c, 0, 0)),
            w_spec,
            pl.BlockSpec((cout, 1), lambda b, c: (0, 0)),
        ],
        out_specs=pl.BlockSpec((None, cout, HW), lambda b, c: (b, 0, 0)),
        scratch_shapes=scratch,
        compiler_params=pltpu.CompilerParams(
            dimension_semantics=("parallel", "arbitrary")),
        cost_estimate=cost,
    )(x, w_arg, shift)

    # free reshape (row-major compatible) back to NCHW
    return out.reshape(N, cout, H, W)


def spp_reference(x, w_conv, gamma, beta, mean, var, pool_sizes, eps=1e-5):
    """Plain-JAX reference (NCHW), mirrors the PyTorch module."""
    outs = [x]
    for s in pool_sizes:
        p = s // 2
        pooled = jax.lax.reduce_window(
            x, -jnp.inf, jax.lax.max, (1, 1, s, s), (1, 1, 1, 1),
            ((0, 0), (0, 0), (p, p), (p, p)))
        outs.append(pooled)
    y = jnp.concatenate(outs, axis=1)
    w2 = w_conv.reshape(w_conv.shape[0], -1)
    y = jnp.einsum('nchw,oc->nohw', y, w2, precision=jax.lax.Precision.HIGHEST)
    s_ = gamma / jnp.sqrt(var + eps)
    y = y * s_[None, :, None, None] + (beta - mean * s_)[None, :, None, None]
    return y * jax.nn.sigmoid(y)


if __name__ == "__main__":
    key = jax.random.PRNGKey(0)

    def run_case(k, N, C, H, W, ch_out, pool_sizes, w_scale, c_tile=None):
        k1, k2, k3, k4, k5, k6 = jax.random.split(k, 6)
        ch_in = C * (1 + len(pool_sizes))
        x = jax.random.normal(k1, (N, C, H, W), jnp.float32)
        w = jax.random.normal(k2, (ch_out, ch_in, 1, 1), jnp.float32) * w_scale
        gamma = 1.0 + 0.1 * jax.random.normal(k3, (ch_out,), jnp.float32)
        beta = 0.1 * jax.random.normal(k4, (ch_out,), jnp.float32)
        mean = 0.1 * jax.random.normal(k5, (ch_out,), jnp.float32)
        var = jax.random.uniform(k6, (ch_out,), jnp.float32, minval=0.5, maxval=1.5)

        out = spp_forward(x, w, gamma, beta, mean, var, pool_sizes, c_tile=c_tile)
        out = jax.block_until_ready(out)
        ref = spp_reference(x, w, gamma, beta, mean, var, pool_sizes)
        assert out.shape == (N, ch_out, H, W), out.shape
        err = float(jnp.max(jnp.abs(out - ref)))
        assert err < 2e-3, err
        return err

    k1, k2 = jax.random.split(key)
    # Small config from the spec: single channel tile, packed single-dot MXU path.
    run_case(k1, N=2, C=4, H=16, W=16, ch_out=8, pool_sizes=(5, 9, 13), w_scale=0.1)
    # Detection-like config: exercises the channel-tiled reduction path (grid=(2, 2)).
    run_case(k2, N=2, C=256, H=8, W=8, ch_out=16, pool_sizes=(5, 9, 13),
             w_scale=0.05, c_tile=128)

    print("KERNEL_OK")
</pallas_src>

<mosaic_0001>
module attributes {stable_mosaic.version = 11 : i64} {
  func.func @spp_kernel(%arg0: i32, %arg1: i32, %arg2: memref<1x4x16x16xf32, #tpu.memory_space<vmem>>, %arg3: memref<8x16xf32, #tpu.memory_space<vmem>>, %arg4: memref<8x1xf32, #tpu.memory_space<vmem>>, %arg5: memref<1x8x256xf32, #tpu.memory_space<vmem>>, %arg6: memref<4x28x28xf32, #tpu.memory_space<vmem>>, %arg7: memref<16x256xf32, #tpu.memory_space<vmem>>) attributes {dimension_semantics = [#tpu.dimension_semantics<parallel>, #tpu.dimension_semantics<arbitrary>], iteration_bounds = array<i64: 2, 1>, scalar_prefetch = 0 : i64, scratch_operands = 2 : i64, tpu.core_type = #tpu.core_type<tc>, window_params = [{transform_indices = @transform_0, window_bounds = array<i64: 1, 4, 16, 16>}, {pipeline_mode = #tpu.pipeline_mode<synchronous>, transform_indices = @transform_1, window_bounds = array<i64: 8, 16>}, {pipeline_mode = #tpu.pipeline_mode<synchronous>, transform_indices = @transform_2, window_bounds = array<i64: 8, 1>}, {transform_indices = @transform_3, window_bounds = array<i64: 1, 8, 256>}]} {
    %c0_i32 = arith.constant 0 : i32
    %0 = arith.cmpi eq, %arg1, %c0_i32 : i32
    %1 = arith.extui %0 : i1 to i32
    %c0_i32_0 = arith.constant 0 : i32
    %2 = arith.cmpi ne, %1, %c0_i32_0 : i32
    scf.if %2 {
      %cst_34 = arith.constant 0.000000e+00 : f32
      %87 = vector.broadcast %cst_34 : f32 to vector<8x256xf32>
      %c0_35 = arith.constant 0 : index
      %c0_36 = arith.constant 0 : index
      %c0_37 = arith.constant 0 : index
      %88 = vector.load %arg5[%c0_35, %c0_36, %c0_37] : memref<1x8x256xf32, #tpu.memory_space<vmem>>, vector<1x8x256xf32>
      %89 = vector.shape_cast %88 : vector<1x8x256xf32> to vector<8x256xf32>
      %90 = vector.shape_cast %87 : vector<8x256xf32> to vector<1x8x256xf32>
      tpu.vector_store %arg5[%c0_35, %c0_36, %c0_37], %90 {strides = array<i32>} : memref<1x8x256xf32, #tpu.memory_space<vmem>>, vector<1x8x256xf32>,
    } else {
    }
    %cst = arith.constant 0xFF800000 : f32
    %3 = vector.broadcast %cst : f32 to vector<4x28x28xf32>
    %c0 = arith.constant 0 : index
    %c0_1 = arith.constant 0 : index
    %c0_2 = arith.constant 0 : index
    %4 = vector.load %arg6[%c0, %c0_1, %c0_2] : memref<4x28x28xf32, #tpu.memory_space<vmem>>, vector<4x28x28xf32>
    tpu.vector_store %arg6[%c0, %c0_1, %c0_2], %3 {strides = array<i32>} : memref<4x28x28xf32, #tpu.memory_space<vmem>>, vector<4x28x28xf32>,
    %c0_3 = arith.constant 0 : index
    %c0_4 = arith.constant 0 : index
    %c0_5 = arith.constant 0 : index
    %c0_6 = arith.constant 0 : index
    %5 = vector.load %arg2[%c0_3, %c0_4, %c0_5, %c0_6] : memref<1x4x16x16xf32, #tpu.memory_space<vmem>>, vector<1x4x16x16xf32>
    %6 = vector.shape_cast %5 : vector<1x4x16x16xf32> to vector<4x16x16xf32>
    %c0_7 = arith.constant 0 : index
    %c6 = arith.constant 6 : index
    %c6_8 = arith.constant 6 : index
    %7 = vector.load %arg6[%c0_7, %c6, %c6_8] : memref<4x28x28xf32, #tpu.memory_space<vmem>>, vector<4x16x16xf32>
    tpu.vector_store %arg6[%c0_7, %c6, %c6_8], %6 {strides = array<i32>} : memref<4x28x28xf32, #tpu.memory_space<vmem>>, vector<4x16x16xf32>,
    %c0_9 = arith.constant 0 : index
    %c0_10 = arith.constant 0 : index
    %c0_11 = arith.constant 0 : index
    %8 = vector.load %arg6[%c0_9, %c0_10, %c0_11] : memref<4x28x28xf32, #tpu.memory_space<vmem>>, vector<4x28x28xf32>
    %c0_12 = arith.constant 0 : index
    %c0_13 = arith.constant 0 : index
    %c0_14 = arith.constant 0 : index
    %c0_15 = arith.constant 0 : index
    %9 = vector.load %arg2[%c0_12, %c0_13, %c0_14, %c0_15] : memref<1x4x16x16xf32, #tpu.memory_space<vmem>>, vector<1x4x16x16xf32>
    %10 = vector.shape_cast %9 : vector<1x4x16x16xf32> to vector<4x16x16xf32>
    %11 = vector.shape_cast %10 : vector<4x16x16xf32> to vector<4x256xf32>
    %c0_16 = arith.constant 0 : index
    %c0_17 = arith.constant 0 : index
    %12 = vector.load %arg7[%c0_16, %c0_17] : memref<16x256xf32, #tpu.memory_space<vmem>>, vector<4x256xf32>
    tpu.vector_store %arg7[%c0_16, %c0_17], %11 {strides = array<i32>} : memref<16x256xf32, #tpu.memory_space<vmem>>, vector<4x256xf32>,
    %13 = vector.extract_strided_slice %8 {offsets = [0, 0, 0], sizes = [4, 24, 28], strides = [1, 1, 1]} : vector<4x28x28xf32> to vector<4x24x28xf32>
    %14 = vector.extract_strided_slice %8 {offsets = [0, 1, 0], sizes = [4, 24, 28], strides = [1, 1, 1]} : vector<4x28x28xf32> to vector<4x24x28xf32>
    %15 = arith.maximumf %13, %14 : vector<4x24x28xf32>
    %16 = vector.extract_strided_slice %8 {offsets = [0, 2, 0], sizes = [4, 24, 28], strides = [1, 1, 1]} : vector<4x28x28xf32> to vector<4x24x28xf32>
    %17 = arith.maximumf %15, %16 : vector<4x24x28xf32>
    %18 = vector.extract_strided_slice %8 {offsets = [0, 3, 0], sizes = [4, 24, 28], strides = [1, 1, 1]} : vector<4x28x28xf32> to vector<4x24x28xf32>
    %19 = arith.maximumf %17, %18 : vector<4x24x28xf32>
    %20 = vector.extract_strided_slice %8 {offsets = [0, 4, 0], sizes = [4, 24, 28], strides = [1, 1, 1]} : vector<4x28x28xf32> to vector<4x24x28xf32>
    %21 = arith.maximumf %19, %20 : vector<4x24x28xf32>
    %22 = vector.extract_strided_slice %21 {offsets = [0, 0, 0], sizes = [4, 24, 24], strides = [1, 1, 1]} : vector<4x24x28xf32> to vector<4x24x24xf32>
    %23 = vector.extract_strided_slice %21 {offsets = [0, 0, 1], sizes = [4, 24, 24], strides = [1, 1, 1]} : vector<4x24x28xf32> to vector<4x24x24xf32>
    %24 = arith.maximumf %22, %23 : vector<4x24x24xf32>
    %25 = vector.extract_strided_slice %21 {offsets = [0, 0, 2], sizes = [4, 24, 24], strides = [1, 1, 1]} : vector<4x24x28xf32> to vector<4x24x24xf32>
    %26 = arith.maximumf %24, %25 : vector<4x24x24xf32>
    %27 = vector.extract_strided_slice %21 {offsets = [0, 0, 3], sizes = [4, 24, 24], strides = [1, 1, 1]} : vector<4x24x28xf32> to vector<4x24x24xf32>
    %28 = arith.maximumf %26, %27 : vector<4x24x24xf32>
    %29 = vector.extract_strided_slice %21 {offsets = [0, 0, 4], sizes = [4, 24, 24], strides = [1, 1, 1]} : vector<4x24x28xf32> to vector<4x24x24xf32>
    %30 = arith.maximumf %28, %29 : vector<4x24x24xf32>
    %31 = vector.extract_strided_slice %30 {offsets = [0, 4, 4], sizes = [4, 16, 16], strides = [1, 1, 1]} : vector<4x24x24xf32> to vector<4x16x16xf32>
    %32 = vector.shape_cast %31 : vector<4x16x16xf32> to vector<4x256xf32>
    %c4 = arith.constant 4 : index
    %c0_18 = arith.constant 0 : index
    %33 = vector.load %arg7[%c4, %c0_18] : memref<16x256xf32, #tpu.memory_space<vmem>>, vector<4x256xf32>
    tpu.vector_store %arg7[%c4, %c0_18], %32 {strides = array<i32>} : memref<16x256xf32, #tpu.memory_space<vmem>>, vector<4x256xf32>,
    %34 = vector.extract_strided_slice %30 {offsets = [0, 0, 0], sizes = [4, 20, 24], strides = [1, 1, 1]} : vector<4x24x24xf32> to vector<4x20x24xf32>
    %35 = vector.extract_strided_slice %30 {offsets = [0, 1, 0], sizes = [4, 20, 24], strides = [1, 1, 1]} : vector<4x24x24xf32> to vector<4x20x24xf32>
    %36 = arith.maximumf %34, %35 : vector<4x20x24xf32>
    %37 = vector.extract_strided_slice %30 {offsets = [0, 2, 0], sizes = [4, 20, 24], strides = [1, 1, 1]} : vector<4x24x24xf32> to vector<4x20x24xf32>
    %38 = arith.maximumf %36, %37 : vector<4x20x24xf32>
    %39 = vector.extract_strided_slice %30 {offsets = [0, 3, 0], sizes = [4, 20, 24], strides = [1, 1, 1]} : vector<4x24x24xf32> to vector<4x20x24xf32>
    %40 = arith.maximumf %38, %39 : vector<4x20x24xf32>
    %41 = vector.extract_strided_slice %30 {offsets = [0, 4, 0], sizes = [4, 20, 24], strides = [1, 1, 1]} : vector<4x24x24xf32> to vector<4x20x24xf32>
    %42 = arith.maximumf %40, %41 : vector<4x20x24xf32>
    %43 = vector.extract_strided_slice %42 {offsets = [0, 0, 0], sizes = [4, 20, 20], strides = [1, 1, 1]} : vector<4x20x24xf32> to vector<4x20x20xf32>
    %44 = vector.extract_strided_slice %42 {offsets = [0, 0, 1], sizes = [4, 20, 20], strides = [1, 1, 1]} : vector<4x20x24xf32> to vector<4x20x20xf32>
    %45 = arith.maximumf %43, %44 : vector<4x20x20xf32>
    %46 = vector.extract_strided_slice %42 {offsets = [0, 0, 2], sizes = [4, 20, 20], strides = [1, 1, 1]} : vector<4x20x24xf32> to vector<4x20x20xf32>
    %47 = arith.maximumf %45, %46 : vector<4x20x20xf32>
    %48 = vector.extract_strided_slice %42 {offsets = [0, 0, 3], sizes = [4, 20, 20], strides = [1, 1, 1]} : vector<4x20x24xf32> to vector<4x20x20xf32>
    %49 = arith.maximumf %47, %48 : vector<4x20x20xf32>
    %50 = vector.extract_strided_slice %42 {offsets = [0, 0, 4], sizes = [4, 20, 20], strides = [1, 1, 1]} : vector<4x20x24xf32> to vector<4x20x20xf32>
    %51 = arith.maximumf %49, %50 : vector<4x20x20xf32>
    %52 = vector.extract_strided_slice %51 {offsets = [0, 2, 2], sizes = [4, 16, 16], strides = [1, 1, 1]} : vector<4x20x20xf32> to vector<4x16x16xf32>
    %53 = vector.shape_cast %52 : vector<4x16x16xf32> to vector<4x256xf32>
    %c8 = arith.constant 8 : index
    %c0_19 = arith.constant 0 : index
    %54 = vector.load %arg7[%c8, %c0_19] : memref<16x256xf32, #tpu.memory_space<vmem>>, vector<4x256xf32>
    tpu.vector_store %arg7[%c8, %c0_19], %53 {strides = array<i32>} : memref<16x256xf32, #tpu.memory_space<vmem>>, vector<4x256xf32>,
    %55 = vector.extract_strided_slice %51 {offsets = [0, 0, 0], sizes = [4, 16, 20], strides = [1, 1, 1]} : vector<4x20x20xf32> to vector<4x16x20xf32>
    %56 = vector.extract_strided_slice %51 {offsets = [0, 1, 0], sizes = [4, 16, 20], strides = [1, 1, 1]} : vector<4x20x20xf32> to vector<4x16x20xf32>
    %57 = arith.maximumf %55, %56 : vector<4x16x20xf32>
    %58 = vector.extract_strided_slice %51 {offsets = [0, 2, 0], sizes = [4, 16, 20], strides = [1, 1, 1]} : vector<4x20x20xf32> to vector<4x16x20xf32>
    %59 = arith.maximumf %57, %58 : vector<4x16x20xf32>
    %60 = vector.extract_strided_slice %51 {offsets = [0, 3, 0], sizes = [4, 16, 20], strides = [1, 1, 1]} : vector<4x20x20xf32> to vector<4x16x20xf32>
    %61 = arith.maximumf %59, %60 : vector<4x16x20xf32>
    %62 = vector.extract_strided_slice %51 {offsets = [0, 4, 0], sizes = [4, 16, 20], strides = [1, 1, 1]} : vector<4x20x20xf32> to vector<4x16x20xf32>
    %63 = arith.maximumf %61, %62 : vector<4x16x20xf32>
    %64 = vector.extract_strided_slice %63 {offsets = [0, 0, 0], sizes = [4, 16, 16], strides = [1, 1, 1]} : vector<4x16x20xf32> to vector<4x16x16xf32>
    %65 = vector.extract_strided_slice %63 {offsets = [0, 0, 1], sizes = [4, 16, 16], strides = [1, 1, 1]} : vector<4x16x20xf32> to vector<4x16x16xf32>
    %66 = arith.maximumf %64, %65 : vector<4x16x16xf32>
    %67 = vector.extract_strided_slice %63 {offsets = [0, 0, 2], sizes = [4, 16, 16], strides = [1, 1, 1]} : vector<4x16x20xf32> to vector<4x16x16xf32>
    %68 = arith.maximumf %66, %67 : vector<4x16x16xf32>
    %69 = vector.extract_strided_slice %63 {offsets = [0, 0, 3], sizes = [4, 16, 16], strides = [1, 1, 1]} : vector<4x16x20xf32> to vector<4x16x16xf32>
    %70 = arith.maximumf %68, %69 : vector<4x16x16xf32>
    %71 = vector.extract_strided_slice %63 {offsets = [0, 0, 4], sizes = [4, 16, 16], strides = [1, 1, 1]} : vector<4x16x20xf32> to vector<4x16x16xf32>
    %72 = arith.maximumf %70, %71 : vector<4x16x16xf32>
    %73 = vector.shape_cast %72 : vector<4x16x16xf32> to vector<4x256xf32>
    %c12 = arith.constant 12 : index
    %c0_20 = arith.constant 0 : index
    %74 = vector.load %arg7[%c12, %c0_20] : memref<16x256xf32, #tpu.memory_space<vmem>>, vector<4x256xf32>
    tpu.vector_store %arg7[%c12, %c0_20], %73 {strides = array<i32>} : memref<16x256xf32, #tpu.memory_space<vmem>>, vector<4x256xf32>,
    %c0_21 = arith.constant 0 : index
    %c0_22 = arith.constant 0 : index
    %75 = vector.load %arg3[%c0_21, %c0_22] : memref<8x16xf32, #tpu.memory_space<vmem>>, vector<8x16xf32>
    %c0_23 = arith.constant 0 : index
    %c0_24 = arith.constant 0 : index
    %76 = vector.load %arg7[%c0_23, %c0_24] : memref<16x256xf32, #tpu.memory_space<vmem>>, vector<16x256xf32>
    %cst_25 = arith.constant dense<0.000000e+00> : vector<8x256xf32>
    %77 = tpu.matmul %75, %76, %cst_25 {dimension_numbers = #tpu.dot_dimension_numbers<[1], [0], [0], [1], [0, 0, 1, 1], [], []>} : vector<8x16xf32>, vector<16x256xf32>, vector<8x256xf32> -> vector<8x256xf32>
    %c0_26 = arith.constant 0 : index
    %c0_27 = arith.constant 0 : index
    %c0_28 = arith.constant 0 : index
    %78 = vector.load %arg5[%c0_26, %c0_27, %c0_28] : memref<1x8x256xf32, #tpu.memory_space<vmem>>, vector<1x8x256xf32>
    %79 = vector.shape_cast %78 : vector<1x8x256xf32> to vector<8x256xf32>
    %80 = arith.addf %79, %77 : vector<8x256xf32>
    %c0_29 = arith.constant 0 : index
    %c0_30 = arith.constant 0 : index
    %c0_31 = arith.constant 0 : index
    %81 = vector.load %arg5[%c0_29, %c0_30, %c0_31] : memref<1x8x256xf32, #tpu.memory_space<vmem>>, vector<1x8x256xf32>
    %82 = vector.shape_cast %81 : vector<1x8x256xf32> to vector<8x256xf32>
    %83 = vector.shape_cast %80 : vector<8x256xf32> to vector<1x8x256xf32>
    tpu.vector_store %arg5[%c0_29, %c0_30, %c0_31], %83 {strides = array<i32>} : memref<1x8x256xf32, #tpu.memory_space<vmem>>, vector<1x8x256xf32>,
    %c0_i32_32 = arith.constant 0 : i32
    %84 = arith.cmpi eq, %arg1, %c0_i32_32 : i32
    %85 = arith.extui %84 : i1 to i32
    %c0_i32_33 = arith.constant 0 : i32
    %86 = arith.cmpi ne, %85, %c0_i32_33 : i32
    scf.if %86 {
      %c0_34 = arith.constant 0 : index
      %c0_35 = arith.constant 0 : index
      %c0_36 = arith.constant 0 : index
      %87 = vector.load %arg5[%c0_34, %c0_35, %c0_36] : memref<1x8x256xf32, #tpu.memory_space<vmem>>, vector<1x8x256xf32>
      %88 = vector.shape_cast %87 : vector<1x8x256xf32> to vector<8x256xf32>
      %c0_37 = arith.constant 0 : index
      %c0_38 = arith.constant 0 : index
      %89 = vector.load %arg4[%c0_37, %c0_38] : memref<8x1xf32, #tpu.memory_space<vmem>>, vector<8x1xf32>
      %90 = vector.broadcast %89 : vector<8x1xf32> to vector<8x256xf32>
      %91 = arith.addf %88, %90 : vector<8x256xf32>
      %92 = arith.negf %91 : vector<8x256xf32>
      %93 = math.exp %92 : vector<8x256xf32>
      %cst_39 = arith.constant 1.000000e+00 : f32
      %94 = vector.broadcast %cst_39 : f32 to vector<8x256xf32>
      %95 = arith.addf %94, %93 : vector<8x256xf32>
      %96 = arith.divf %94, %95 : vector<8x256xf32>
      %97 = arith.mulf %91, %96 : vector<8x256xf32>
      %c0_40 = arith.constant 0 : index
      %c0_41 = arith.constant 0 : index
      %c0_42 = arith.constant 0 : index
      %98 = vector.load %arg5[%c0_40, %c0_41, %c0_42] : memref<1x8x256xf32, #tpu.memory_space<vmem>>, vector<1x8x256xf32>
      %99 = vector.shape_cast %98 : vector<1x8x256xf32> to vector<8x256xf32>
      %100 = vector.shape_cast %97 : vector<8x256xf32> to vector<1x8x256xf32>
      tpu.vector_store %arg5[%c0_40, %c0_41, %c0_42], %100 {strides = array<i32>} : memref<1x8x256xf32, #tpu.memory_space<vmem>>, vector<1x8x256xf32>,
    } else {
    }
    return
  }
  func.func @transform_0(%arg0: i32, %arg1: i32) -> (i32, i32, i32, i32) {
    %c0_i32 = arith.constant 0 : i32
    %c0_i32_0 = arith.constant 0 : i32
    %c0_i32_1 = arith.constant 0 : i32
    return %arg0, %arg1, %c0_i32, %c0_i32_0 : i32, i32, i32, i32
  }
  func.func @transform_1(%arg0: i32, %arg1: i32) -> (i32, i32) {
    %c0_i32 = arith.constant 0 : i32
    %c0_i32_0 = arith.constant 0 : i32
    %c0_i32_1 = arith.constant 0 : i32
    return %c0_i32, %c0_i32_0 : i32, i32
  }
  func.func @transform_2(%arg0: i32, %arg1: i32) -> (i32, i32) {
    %c0_i32 = arith.constant 0 : i32
    %c0_i32_0 = arith.constant 0 : i32
    %c0_i32_1 = arith.constant 0 : i32
    return %c0_i32, %c0_i32_0 : i32, i32
  }
  func.func @transform_3(%arg0: i32, %arg1: i32) -> (i32, i32, i32) {
    %c0_i32 = arith.constant 0 : i32
    %c0_i32_0 = arith.constant 0 : i32
    %c0_i32_1 = arith.constant 0 : i32
    return %arg0, %c0_i32, %c0_i32_0 : i32, i32, i32
  }
}

</mosaic_0001>

<llo_original>
// kernel: tpu_custom_call.1
$region0: #{tpu_custom_call.1}
  #allocation0 [shape = 'u32[]', space=smem, size = 0x4, offset = 0x4, fixed_abs, tag = 'smem constant byte address 0x4 - core index']
  #allocation1 [shape = 'u32[144,128]{1,0:T(1,128)}', space=vmem, size = 0x12000, scoped, tag = 'internal scratch']
  #allocation2 [shape = 'f32[4,28,28]{2,1,0:T(8,128)}', space=vmem, size = 0x10000, scoped, tag = 'scratch operand']
  #allocation3 [shape = 'f32[16,256]{1,0:T(8,128)}', space=vmem, size = 0x4000, scoped, tag = 'scratch operand']
  %s0 = inlined_call_operand.hbm [shape: f32[2,4,16,16], index: 0, kind: input, shape index: {}]
  %s1 = inlined_call_operand.vmem [shape: f32[8,16], index: 1, kind: input, shape index: {}]
  %s2 = inlined_call_operand.vmem [shape: f32[8,1], index: 2, kind: input, shape index: {}]
  %s3 = inlined_call_operand.hbm [shape: f32[2,8,256], index: 3, kind: output, shape index: {}]
  %s4 = sld [smem:[#allocation0]]
  $region57: #{tpu_custom_call.1} parent=0
    _
  %s6 = ssub.s32 1, %s4
  %s7 = scalar_select 0, %s6, %s4
  $region1: #{tpu_custom_call.1} parent=0
    #allocation4 [shape = 'u8[65536]{0}', space=vmem, size = 0x10000, scoped, tag = 'input window, operand 0']
    #allocation5 [shape = 's32[2]{0}', space=sflag, size = 0x8, scoped, tag = 'scoped memory for tpu_custom_call.1']
    #allocation6 [shape = 's32[2]{0}', space=sflag, size = 0x8, scoped, tag = 'scoped memory for tpu_custom_call.1']
    #allocation7 [shape = 'u8[16384]{0}', space=vmem, size = 0x4000, scoped, tag = 'output window, operand 0']
    %8 = vsyncpa [#allocation5], 0
    %s9 = scalar_lea.sflag [#allocation5], 1
    %10 = vsyncpa %s9, 0
    %11 = vsyncpa [#allocation6], 0
    %s12 = scalar_lea.sflag [#allocation6], 1
    %13 = vsyncpa %s12, 0
    loop: start=0, step=1, limit=4
    $region2: #{tpu_custom_call.1} parent=1 // loop_pre_header
      _
    $region3: #{tpu_custom_call.1} parent=1 // loop_header
      %s15 = sphi 0, %s19
      %p16 = scmp.ge.s32.totalorder %s15, 4
      %s22 = sphi 0, %s34
      %s23 = sphi 0, %s30
      %s24 = sphi 0, %s22
      %s25 = sphi 0, %s23
      %s26 = sphi 0, %s24
      %s27 = sphi 0, %s25
      %s39 = sphi 0, %s41
      %s42 = sphi 0, %s39
      %s43 = sphi 0, %s42
      %s59 = sphi 0, %s43
      %s63 = sphi 0, %s63
      %s65 = sphi 0, %s63
      %s66 = sphi 0, %s65
      %s80 = sphi 0, %s66
      %s84 = sphi 0, %s84
      %s86 = sphi 0, %s84
      %s87 = sphi 0, %s86
      %s101 = sphi 0, %s87
      %s107 = sphi 0, %s109
      %s110 = sphi 0, %s107
      %s111 = sphi 0, %s110
      %s127 = sphi 0, %s111
    $region4: #{tpu_custom_call.1} parent=1 // loop_header_branch
      %18 = sbr.rel (%p16) target = $region8
    $region5: #{tpu_custom_call.1} parent=1 // loop_body
      %s20 = ssub.s32 %s15, 1
      %s21 = ssub.s32 %s15, 2
      %s28 = sadd.s32 1, %s23
      %p29 = scmp.ge.s32.totalorder %s28, 1
      %s30 = scalar_select %p29, 0, %s28
      %s31 = sadd.s32 1, %s22
      %s32 = scalar_select %p29, %s31, %s22
      %p33 = scmp.ge.s32.totalorder %s32, 2
      %s34 = scalar_select %p33, 0, %s32
      %s35 = ssub.s32 %s22, %s34
      %s36 = ssub.s32 %s23, %s30
      %s37 = sor.u32 %s35, %s36
      %p38 = scmp.eq.s32.totalorder %s37, 0
      %s40 = sadd.s32 %s39, 1
      %s41 = scalar_select %p38, %s39, %s40
      %p44 = pneg %p38
      %p45 = scmp.eq.s32.totalorder %s15, 1
      %p46 = por %p44, %p45
      %p47 = scmp.ne.s32.totalorder %s39, %s42
      %p48 = scmp.eq.s32.totalorder %s15, 0
      %p49 = por %p47, %p48
      %p50 = scmp.ne.s32.totalorder %s39, %s42
      %p51 = scmp.eq.s32.totalorder %s20, 1
      %p52 = por %p50, %p51
      %p53 = scmp.ne.s32.totalorder %s42, %s43
      %p54 = scmp.eq.s32.totalorder %s20, 0
      %p55 = por %p53, %p54
      %p56 = scmp.ne.s32.totalorder %s42, %s43
      %p57 = scmp.eq.s32.totalorder %s21, 1
      %p58 = por %p56, %p57
      %p60 = scmp.ne.s32.totalorder %s43, %s59
      %p61 = scmp.eq.s32.totalorder %s21, 0
      %p62 = por %p60, %p61
      %s64 = sadd.s32 %s63, 1
      %p67 = scmp.eq.s32.totalorder %s15, 1
      %p68 = scmp.ne.s32.totalorder %s63, %s65
      %p69 = scmp.eq.s32.totalorder %s15, 0
      %p70 = por %p68, %p69
      %p71 = scmp.ne.s32.totalorder %s63, %s65
      %p72 = scmp.eq.s32.totalorder %s20, 1
      %p73 = por %p71, %p72
      %p74 = scmp.ne.s32.totalorder %s65, %s66
      %p75 = scmp.eq.s32.totalorder %s20, 0
      %p76 = por %p74, %p75
      %p77 = scmp.ne.s32.totalorder %s65, %s66
      %p78 = scmp.eq.s32.totalorder %s21, 1
      %p79 = por %p77, %p78
      %p81 = scmp.ne.s32.totalorder %s66, %s80
      %p82 = scmp.eq.s32.totalorder %s21, 0
      %p83 = por %p81, %p82
      %s85 = sadd.s32 %s84, 1
      %p88 = scmp.eq.s32.totalorder %s15, 1
      %p89 = scmp.ne.s32.totalorder %s84, %s86
      %p90 = scmp.eq.s32.totalorder %s15, 0
      %p91 = por %p89, %p90
      %p92 = scmp.ne.s32.totalorder %s84, %s86
      %p93 = scmp.eq.s32.totalorder %s20, 1
      %p94 = por %p92, %p93
      %p95 = scmp.ne.s32.totalorder %s86, %s87
      %p96 = scmp.eq.s32.totalorder %s20, 0
      %p97 = por %p95, %p96
      %p98 = scmp.ne.s32.totalorder %s86, %s87
      %p99 = scmp.eq.s32.totalorder %s21, 1
      %p100 = por %p98, %p99
      %p102 = scmp.ne.s32.totalorder %s87, %s101
      %p103 = scmp.eq.s32.totalorder %s21, 0
      %p104 = por %p102, %p103
      %s105 = ssub.s32 %s22, %s34
      %p106 = scmp.eq.s32.totalorder %s105, 0
      %s108 = sadd.s32 %s107, 1
      %s109 = scalar_select %p106, %s107, %s108
      %p112 = pneg %p106
      %p113 = scmp.eq.s32.totalorder %s15, 1
      %p114 = por %p112, %p113
      %p115 = scmp.ne.s32.totalorder %s107, %s110
      %p116 = scmp.eq.s32.totalorder %s15, 0
      %p117 = por %p115, %p116
      %p118 = scmp.ne.s32.totalorder %s107, %s110
      %p119 = scmp.eq.s32.totalorder %s20, 1
      %p120 = por %p118, %p119
      %p121 = scmp.ne.s32.totalorder %s110, %s111
      %p122 = scmp.eq.s32.totalorder %s20, 0
      %p123 = por %p121, %p122
      %p124 = scmp.ne.s32.totalorder %s110, %s111
      %p125 = scmp.eq.s32.totalorder %s21, 1
      %p126 = por %p124, %p125
      %p128 = scmp.ne.s32.totalorder %s111, %s127
      %p129 = scmp.eq.s32.totalorder %s21, 0
      %p130 = por %p128, %p129
      %p131 = scmp.le.s32.totalorder 1, %s15
      %p132 = scmp.lt.s32.totalorder %s15, 3
      %p133 = pnand %p131, %p132
      %p134 = pneg %p133
      // Predicated region
      $region9: #{tpu_custom_call.1} parent=5 // pred_check
        _
      $region10: #{tpu_custom_call.1} parent=5 // pred_check_branch
        %136 = sbr.rel (%p133) target = $region12
      $region11: #{tpu_custom_call.1} parent=5 // pred_region
        %s137 = ssub.s32 %s15, 1
        // Predicated region
        $region13: #{tpu_custom_call.1} parent=11 // pred_check
          %p138 = pneg %p76
        $region14: #{tpu_custom_call.1} parent=11 // pred_check_branch
          %140 = sbr.rel (%p138) target = $region16
        $region15: #{tpu_custom_call.1} parent=11 // pred_region
          _
        $region16: #{tpu_custom_call.1} parent=11 // pred_fallthru
          _
        // Predicated region
        $region17: #{tpu_custom_call.1} parent=11 // pred_check
          %p141 = pneg %p97
        $region18: #{tpu_custom_call.1} parent=11 // pred_check_branch
          %143 = sbr.rel (%p141) target = $region20
        $region19: #{tpu_custom_call.1} parent=11 // pred_region
          _
        $region20: #{tpu_custom_call.1} parent=11 // pred_fallthru
          _
      $region12: #{tpu_custom_call.1} parent=5 // pred_fallthru
        _
      %p144 = scmp.lt.s32.totalorder %s15, 2
      // Predicated region
      $region21: #{tpu_custom_call.1} parent=5 // pred_check
        %p145 = pneg %p144
      $region22: #{tpu_custom_call.1} parent=5 // pred_check_branch
        %147 = sbr.rel (%p145) target = $region24
      $region23: #{tpu_custom_call.1} parent=5 // pred_region
        // Predicated region
        $region25: #{tpu_custom_call.1} parent=23 // pred_check
          %p148 = pneg %p49
        $region26: #{tpu_custom_call.1} parent=23 // pred_check_branch
          %150 = sbr.rel (%p148) target = $region28
        $region27: #{tpu_custom_call.1} parent=23 // pred_region
          %s151 = sand.u32 %s39, 1
          %s152 = scalar_lea.sflag [#allocation5], %s151
          %s153 = sand.u32 %s39, 1
          %s154 = smul.addr %s153, 64
          %s155 = scalar_lea.vmem [#allocation4], %s154
          %s156 = smul.u32 4, %s23
          %s158 = ssub.s32 1024, 1024
          %159 = vsyncadd %s152, %s158
          %s160 = smul.addr %s156, 2
          %s161 = smul.addr %s22, 8
          %s162 = sadd.s32 %s160, %s161
          %s163 = smul.addr %s162, 128
          %s164 = scalar_lea.hbm %s0, %s163
          %s165 = sshll.u32 %s155, 4
          %s166 = int_to_ptr.vmem [resolvable:$true] %s165
          %171 = dma.hbm_to_vmem [thread:$0]  %s164, 1024, %s166, %s152, 128, 128, 8
        $region28: #{tpu_custom_call.1} parent=23 // pred_fallthru
          _
      $region24: #{tpu_custom_call.1} parent=5 // pred_fallthru
        _
      %p172 = scmp.le.s32.totalorder 1, %s15
      %p173 = scmp.lt.s32.totalorder %s15, 3
      %p174 = pnand %p172, %p173
      %p175 = pneg %p174
      // Predicated region
      $region29: #{tpu_custom_call.1} parent=5 // pred_check
        _
      $region30: #{tpu_custom_call.1} parent=5 // pred_check_branch
        %177 = sbr.rel (%p174) target = $region32
      $region31: #{tpu_custom_call.1} parent=5 // pred_region
        %s178 = ssub.s32 %s15, 1
        %s179 = sand.u32 %s42, 1
        %s180 = scalar_lea.sflag [#allocation5], %s179
        %s181 = sand.u32 %s42, 1
        %s182 = smul.addr %s181, 64
        %s183 = scalar_lea.vmem [#allocation4], %s182
        // Predicated region
        $region33: #{tpu_custom_call.1} parent=31 // pred_check
          %p184 = pneg %p55
        $region34: #{tpu_custom_call.1} parent=31 // pred_check_branch
          %186 = sbr.rel (%p184) target = $region36
        $region35: #{tpu_custom_call.1} parent=31 // pred_region
          %187 = dma.done %s180, 1024
        $region36: #{tpu_custom_call.1} parent=31 // pred_fallthru
          _
        %s188 = sand.u32 %s42, 1
        %s189 = scalar_lea.sflag [#allocation5], %s188
        %s190 = sand.u32 %s42, 1
        %s191 = smul.addr %s190, 64
        %s192 = scalar_lea.vmem [#allocation4], %s191
        %p193 = pneg %p55
        %p194 = pneg %p52
        %p195 = pneg %p76
        %p196 = pneg %p73
        %p197 = pneg %p97
        %p198 = pneg %p94
        %p199 = pneg %p123
        %p200 = pneg %p120
        %s201 = sand.u32 %s110, 1
        %s202 = scalar_lea.sflag [#allocation6], %s201
        %s203 = sand.u32 %s110, 1
        %s204 = smul.addr %s203, 16
        %s205 = scalar_lea.vmem [#allocation7], %s204
        %s206 = smul.u32 4, %s25
        %p207 = scmp.eq.s32.totalorder %s25, 0
        // Predicated region
        $region37: #{tpu_custom_call.1} parent=31 // pred_check
          %p208 = pneg %p207
        $region38: #{tpu_custom_call.1} parent=31 // pred_check_branch
          %210 = sbr.rel (%p208) target = $region40
        $region39: #{tpu_custom_call.1} parent=31 // pred_region
          %211 = vst [vmem:[%s205] sm:$0xff] 0.0
          %212 = vst [vmem:[%s205 + $0x8] sm:$0xff] 0.0
        $region40: #{tpu_custom_call.1} parent=31 // pred_fallthru
          _
        %vm213 = vcmask 228352
        %214 = vst.msk [vmem:[#allocation2] sm:$0xff] %vm213, -inf
        %215 = vst.msk [vmem:[#allocation2 + $0x8] sm:$0xff] %vm213, -inf
        %216 = vst.msk [vmem:[#allocation2 + $0x10] sm:$0xff] %vm213, -inf
        %vm217 = vcmask 224256
        %218 = vst.msk [vmem:[#allocation2 + $0x18] sm:$0xf] %vm217, -inf
        %219 = vst.msk [vmem:[#allocation2 + $0x20] sm:$0xff] %vm213, -inf
        %220 = vst.msk [vmem:[#allocation2 + $0x28] sm:$0xff] %vm213, -inf
        %221 = vst.msk [vmem:[#allocation2 + $0x30] sm:$0xff] %vm213, -inf
        %222 = vst.msk [vmem:[#allocation2 + $0x38] sm:$0xf] %vm217, -inf
        %223 = vst.msk [vmem:[#allocation2 + $0x40] sm:$0xff] %vm213, -inf
        %224 = vst.msk [vmem:[#allocation2 + $0x48] sm:$0xff] %vm213, -inf
        %225 = vst.msk [vmem:[#allocation2 + $0x50] sm:$0xff] %vm213, -inf
        %226 = vst.msk [vmem:[#allocation2 + $0x58] sm:$0xf] %vm217, -inf
        %227 = vst.msk [vmem:[#allocation2 + $0x60] sm:$0xff] %vm213, -inf
        %228 = vst.msk [vmem:[#allocation2 + $0x68] sm:$0xff] %vm213, -inf
        %229 = vst.msk [vmem:[#allocation2 + $0x70] sm:$0xff] %vm213, -inf
        %230 = vst.msk [vmem:[#allocation2 + $0x78] sm:$0xf] %vm217, -inf
        %v231 = vld [vmem:[%s183] sm:$0xff]
        %v232 = vld [vmem:[%s183 + $0x8] sm:$0xff]
        %v233 = vld [vmem:[%s183 + $0x10] sm:$0xff]
        %v234 = vld [vmem:[%s183 + $0x18] sm:$0xff]
        %v235 = vld [vmem:[%s183 + $0x20] sm:$0xff]
        %v236 = vld [vmem:[%s183 + $0x28] sm:$0xff]
        %v237 = vld [vmem:[%s183 + $0x30] sm:$0xff]
        %v238 = vld [vmem:[%s183 + $0x38] sm:$0xff]
        %247 = vrot.lane.b32.xlu0 %v231, 6
        %v248 = vpop.permute.xlu0 %247
        %249 = vrot.lane.b32.xlu0 %v232, 6
        %v250 = vpop.permute.xlu0 %249
        %251 = vrot.lane.b32.xlu0 %v233, 6
        %v252 = vpop.permute.xlu0 %251
        %253 = vrot.lane.b32.xlu0 %v234, 6
        %v254 = vpop.permute.xlu0 %253
        %255 = vrot.lane.b32.xlu0 %v235, 6
        %v256 = vpop.permute.xlu0 %255
        %257 = vrot.lane.b32.xlu0 %v236, 6
        %v258 = vpop.permute.xlu0 %257
        %259 = vrot.lane.b32.xlu0 %v237, 6
        %v260 = vpop.permute.xlu0 %259
        %261 = vrot.lane.b32.xlu0 %v238, 6
        %v262 = vpop.permute.xlu0 %261
        %vm271 = vcmask 179248
        %272 = vst.msk [vmem:[#allocation2 + $0x6] sm:$0xff] %vm271, %v248
        %273 = vst.msk [vmem:[#allocation2 + $0xe] sm:$0xff] %vm271, %v250
        %274 = vst.msk [vmem:[#allocation2 + $0x26] sm:$0xff] %vm271, %v252
        %275 = vst.msk [vmem:[#allocation2 + $0x2e] sm:$0xff] %vm271, %v254
        %276 = vst.msk [vmem:[#allocation2 + $0x46] sm:$0xff] %vm271, %v256
        %277 = vst.msk [vmem:[#allocation2 + $0x4e] sm:$0xff] %vm271, %v258
        %278 = vst.msk [vmem:[#allocation2 + $0x66] sm:$0xff] %vm271, %v260
        %279 = vst.msk [vmem:[#allocation2 + $0x6e] sm:$0xff] %vm271, %v262
        %v280 = vld [vmem:[#allocation2] sm:$0xff]
        %v281 = vld [vmem:[#allocation2 + $0x8] sm:$0xff]
        %v282 = vld [vmem:[#allocation2 + $0x10] sm:$0xff]
        %v283 = vld [vmem:[#allocation2 + $0x18] sm:$0xf]
        %v284 = vld [vmem:[#allocation2 + $0x20] sm:$0xff]
        %v285 = vld [vmem:[#allocation2 + $0x28] sm:$0xff]
        %v286 = vld [vmem:[#allocation2 + $0x30] sm:$0xff]
        %v287 = vld [vmem:[#allocation2 + $0x38] sm:$0xf]
        %v288 = vld [vmem:[#allocation2 + $0x40] sm:$0xff]
        %v289 = vld [vmem:[#allocation2 + $0x48] sm:$0xff]
        %v290 = vld [vmem:[#allocation2 + $0x50] sm:$0xff]
        %v291 = vld [vmem:[#allocation2 + $0x58] sm:$0xf]
        %v292 = vld [vmem:[#allocation2 + $0x60] sm:$0xff]
        %v293 = vld [vmem:[#allocation2 + $0x68] sm:$0xff]
        %v294 = vld [vmem:[#allocation2 + $0x70] sm:$0xff]
        %v295 = vld [vmem:[#allocation2 + $0x78] sm:$0xf]
        %v296 = vld [vmem:[%s183] sm:$0xff]
        %v297 = vld [vmem:[%s183 + $0x8] sm:$0xff]
        %v298 = vld [vmem:[%s183 + $0x10] sm:$0xff]
        %v299 = vld [vmem:[%s183 + $0x18] sm:$0xff]
        %v300 = vld [vmem:[%s183 + $0x20] sm:$0xff]
        %v301 = vld [vmem:[%s183 + $0x28] sm:$0xff]
        %v302 = vld [vmem:[%s183 + $0x30] sm:$0xff]
        %v303 = vld [vmem:[%s183 + $0x38] sm:$0xff]
        %v304 = vcombine.low %v296, %v300
        %v305 = vcombine.high %v296, %v300
        %v307 = vunpack.c.l.s4 1983009808
        %v308 = vunpack.c.0.s8 %v307
        %v309 = vlaneseq
        %v310 = vshrl.u32 %v309, 7
        %v311 = vsub.s32 %v308, %v310
        %v312 = vrot.slane %v304, %v311
        %v314 = vunpack.c.l.s4 1983009808
        %v315 = vunpack.c.0.s8 %v314
        %v316 = vlaneseq
        %v317 = vshrl.u32 %v316, 7
        %v318 = vsub.s32 %v315, %v317
        %v319 = vrot.slane %v305, %v318
        %v320 = vcombine.low %v298, %v302
        %v321 = vcombine.high %v298, %v302
        %v323 = vunpack.c.l.s4 1983009808
        %v324 = vunpack.c.0.s8 %v323
        %v325 = vlaneseq
        %v326 = vshrl.u32 %v325, 7
        %v327 = vsub.s32 %v324, %v326
        %v328 = vrot.slane %v320, %v327
        %v330 = vunpack.c.l.s4 1983009808
        %v331 = vunpack.c.0.s8 %v330
        %v332 = vlaneseq
        %v333 = vshrl.u32 %v332, 7
        %v334 = vsub.s32 %v331, %v333
        %v335 = vrot.slane %v321, %v334
        %v336 = vcombine.low %v312, %v328
        %v337 = vcombine.high %v312, %v328
        %v339 = vunpack.c.l.s4 1934713408
        %v340 = vunpack.c.0.s8 %v339
        %v341 = vlaneseq
        %v342 = vshrl.u32 %v341, 7
        %v343 = vsub.s32 %v340, %v342
        %v344 = vrot.slane %v336, %v343
        %v346 = vunpack.c.l.s4 1934713408
        %v347 = vunpack.c.0.s8 %v346
        %v348 = vlaneseq
        %v349 = vshrl.u32 %v348, 7
        %v350 = vsub.s32 %v347, %v349
        %v351 = vrot.slane %v337, %v350
        %v352 = vcombine.low %v319, %v335
        %v353 = vcombine.high %v319, %v335
        %v355 = vunpack.c.l.s4 1934713408
        %v356 = vunpack.c.0.s8 %v355
        %v357 = vlaneseq
        %v358 = vshrl.u32 %v357, 7
        %v359 = vsub.s32 %v356, %v358
        %v360 = vrot.slane %v352, %v359
        %v362 = vunpack.c.l.s4 1934713408
        %v363 = vunpack.c.0.s8 %v362
        %v364 = vlaneseq
        %v365 = vshrl.u32 %v364, 7
        %v366 = vsub.s32 %v363, %v365
        %v367 = vrot.slane %v353, %v366
        %v368 = vcombine.high %v344, 0.0
        %v369 = vcombine.high %v351, 0.0
        %v370 = vcombine.high %v360, 0.0
        %v371 = vcombine.high %v367, 0.0
        %v372 = vcombine.low %v297, %v301
        %v373 = vcombine.high %v297, %v301
        %v375 = vunpack.c.l.s4 1983009808
        %v376 = vunpack.c.0.s8 %v375
        %v377 = vlaneseq
        %v378 = vshrl.u32 %v377, 7
        %v379 = vsub.s32 %v376, %v378
        %v380 = vrot.slane %v372, %v379
        %v382 = vunpack.c.l.s4 1983009808
        %v383 = vunpack.c.0.s8 %v382
        %v384 = vlaneseq
        %v385 = vshrl.u32 %v384, 7
        %v386 = vsub.s32 %v383, %v385
        %v387 = vrot.slane %v373, %v386
        %v388 = vcombine.low %v299, %v303
        %v389 = vcombine.high %v299, %v303
        %v391 = vunpack.c.l.s4 1983009808
        %v392 = vunpack.c.0.s8 %v391
        %v393 = vlaneseq
        %v394 = vshrl.u32 %v393, 7
        %v395 = vsub.s32 %v392, %v394
        %v396 = vrot.slane %v388, %v395
        %v398 = vunpack.c.l.s4 1983009808
        %v399 = vunpack.c.0.s8 %v398
        %v400 = vlaneseq
        %v401 = vshrl.u32 %v400, 7
        %v402 = vsub.s32 %v399, %v401
        %v403 = vrot.slane %v389, %v402
        %v404 = vcombine.low %v380, %v396
        %v405 = vcombine.high %v380, %v396
        %v407 = vunpack.c.l.s4 1934713408
        %v408 = vunpack.c.0.s8 %v407
        %v409 = vlaneseq
        %v410 = vshrl.u32 %v409, 7
        %v411 = vsub.s32 %v408, %v410
        %v412 = vrot.slane %v404, %v411
        %v414 = vunpack.c.l.s4 1934713408
        %v415 = vunpack.c.0.s8 %v414
        %v416 = vlaneseq
        %v417 = vshrl.u32 %v416, 7
        %v418 = vsub.s32 %v415, %v417
        %v419 = vrot.slane %v405, %v418
        %v420 = vcombine.low %v387, %v403
        %v421 = vcombine.high %v387, %v403
        %v423 = vunpack.c.l.s4 1934713408
        %v424 = vunpack.c.0.s8 %v423
        %v425 = vlaneseq
        %v426 = vshrl.u32 %v425, 7
        %v427 = vsub.s32 %v424, %v426
        %v428 = vrot.slane %v420, %v427
        %v430 = vunpack.c.l.s4 1934713408
        %v431 = vunpack.c.0.s8 %v430
        %v432 = vlaneseq
        %v433 = vshrl.u32 %v432, 7
        %v434 = vsub.s32 %v431, %v433
        %v435 = vrot.slane %v421, %v434
        %v436 = vcombine.high %v412, 0.0
        %v437 = vcombine.high %v419, 0.0
        %v438 = vcombine.high %v428, 0.0
        %v439 = vcombine.high %v435, 0.0
        %441 = vrot.lane.b32.xlu0 %v368, 16
        %v442 = vpop.permute.xlu0 %441
        %445 = vrot.lane.b32.xlu0 %v351, 32
        %v446 = vpop.permute.xlu0 %445
        %449 = vrot.lane.b32.xlu0 %v369, 48
        %v450 = vpop.permute.xlu0 %449
        %453 = vrot.lane.b32.xlu0 %v360, 64
        %v454 = vpop.permute.xlu0 %453
        %457 = vrot.lane.b32.xlu0 %v370, 80
        %v458 = vpop.permute.xlu0 %457
        %461 = vrot.lane.b32.xlu0 %v367, 96
        %v462 = vpop.permute.xlu0 %461
        %465 = vrot.lane.b32.xlu0 %v371, 112
        %v466 = vpop.permute.xlu0 %465
        %469 = vrot.lane.b32.xlu0 %v436, 16
        %v470 = vpop.permute.xlu0 %469
        %473 = vrot.lane.b32.xlu0 %v419, 32
        %v474 = vpop.permute.xlu0 %473
        %477 = vrot.lane.b32.xlu0 %v437, 48
        %v478 = vpop.permute.xlu0 %477
        %481 = vrot.lane.b32.xlu0 %v428, 64
        %v482 = vpop.permute.xlu0 %481
        %485 = vrot.lane.b32.xlu0 %v438, 80
        %v486 = vpop.permute.xlu0 %485
        %489 = vrot.lane.b32.xlu0 %v435, 96
        %v490 = vpop.permute.xlu0 %489
        %493 = vrot.lane.b32.xlu0 %v439, 112
        %v494 = vpop.permute.xlu0 %493
        %vm496 = vcmask 130048
        %v497 = vsel %vm496, %v344, %v442
        %vm498 = vcmask 261120
        %v499 = vsel %vm498, %v497, %v446
        %vm500 = vcmask 392192
        %v501 = vsel %vm500, %v499, %v450
        %vm502 = vcmask 523264
        %v503 = vsel %vm502, %v501, %v454
        %vm504 = vcmask 654336
        %v505 = vsel %vm504, %v503, %v458
        %vm506 = vcmask 785408
        %v507 = vsel %vm506, %v505, %v462
        %vm508 = vcmask 916480
        %v509 = vsel %vm508, %v507, %v466
        %v510 = vsel %vm496, %v412, %v470
        %v511 = vsel %vm498, %v510, %v474
        %v512 = vsel %vm500, %v511, %v478
        %v513 = vsel %vm502, %v512, %v482
        %v514 = vsel %vm504, %v513, %v486
        %v515 = vsel %vm506, %v514, %v490
        %v516 = vsel %vm508, %v515, %v494
        %517 = vst [vmem:[#allocation3] sm:$0xf] %v509
        %518 = vst [vmem:[#allocation3 + $0x8] sm:$0xf] %v516
        %vm535 = vcmask 1046528
        %v536 = vrot.slane %v280, 1
        %v537 = vrot.slane %v281, 1
        %v538 = vsel %vm535, %v536, %v537
        %v539 = vrot.slane %v282, 1
        %v540 = vsel %vm535, %v537, %v539
        %v541 = vrot.slane %v283, 1
        %v542 = vsel %vm535, %v539, %v541
        %v543 = vrot.slane %v284, 1
        %v544 = vrot.slane %v285, 1
        %v545 = vsel %vm535, %v543, %v544
        %v546 = vrot.slane %v286, 1
        %v547 = vsel %vm535, %v544, %v546
        %v548 = vrot.slane %v287, 1
        %v549 = vsel %vm535, %v546, %v548
        %v550 = vrot.slane %v288, 1
        %v551 = vrot.slane %v289, 1
        %v552 = vsel %vm535, %v550, %v551
        %v553 = vrot.slane %v290, 1
        %v554 = vsel %vm535, %v551, %v553
        %v555 = vrot.slane %v291, 1
        %v556 = vsel %vm535, %v553, %v555
        %v557 = vrot.slane %v292, 1
        %v558 = vrot.slane %v293, 1
        %v559 = vsel %vm535, %v557, %v558
        %v560 = vrot.slane %v294, 1
        %v561 = vsel %vm535, %v558, %v560
        %v562 = vrot.slane %v295, 1
        %v563 = vsel %vm535, %v560, %v562
        %v576 = vmax.f32 %v280, %v538
        %v577 = vmax.f32 %v281, %v540
        %v578 = vmax.f32 %v282, %v542
        %v579 = vmax.f32 %v284, %v545
        %v580 = vmax.f32 %v285, %v547
        %v581 = vmax.f32 %v286, %v549
        %v582 = vmax.f32 %v288, %v552
        %v583 = vmax.f32 %v289, %v554
        %v584 = vmax.f32 %v290, %v556
        %v585 = vmax.f32 %v292, %v559
        %v586 = vmax.f32 %v293, %v561
        %v587 = vmax.f32 %v294, %v563
        %vm588 = vcmask 1045504
        %v589 = vrot.slane %v280, 2
        %v590 = vrot.slane %v281, 2
        %v591 = vsel %vm588, %v589, %v590
        %v592 = vrot.slane %v282, 2
        %v593 = vsel %vm588, %v590, %v592
        %v594 = vrot.slane %v283, 2
        %v595 = vsel %vm588, %v592, %v594
        %v596 = vrot.slane %v284, 2
        %v597 = vrot.slane %v285, 2
        %v598 = vsel %vm588, %v596, %v597
        %v599 = vrot.slane %v286, 2
        %v600 = vsel %vm588, %v597, %v599
        %v601 = vrot.slane %v287, 2
        %v602 = vsel %vm588, %v599, %v601
        %v603 = vrot.slane %v288, 2
        %v604 = vrot.slane %v289, 2
        %v605 = vsel %vm588, %v603, %v604
        %v606 = vrot.slane %v290, 2
        %v607 = vsel %vm588, %v604, %v606
        %v608 = vrot.slane %v291, 2
        %v609 = vsel %vm588, %v606, %v608
        %v610 = vrot.slane %v292, 2
        %v611 = vrot.slane %v293, 2
        %v612 = vsel %vm588, %v610, %v611
        %v613 = vrot.slane %v294, 2
        %v614 = vsel %vm588, %v611, %v613
        %v615 = vrot.slane %v295, 2
        %v616 = vsel %vm588, %v613, %v615
        %v629 = vmax.f32 %v576, %v591
        %v630 = vmax.f32 %v577, %v593
        %v631 = vmax.f32 %v578, %v595
        %v632 = vmax.f32 %v579, %v598
        %v633 = vmax.f32 %v580, %v600
        %v634 = vmax.f32 %v581, %v602
        %v635 = vmax.f32 %v582, %v605
        %v636 = vmax.f32 %v583, %v607
        %v637 = vmax.f32 %v584, %v609
        %v638 = vmax.f32 %v585, %v612
        %v639 = vmax.f32 %v586, %v614
        %v640 = vmax.f32 %v587, %v616
        %vm641 = vcmask 1044480
        %v642 = vrot.slane %v280, 3
        %v643 = vrot.slane %v281, 3
        %v644 = vsel %vm641, %v642, %v643
        %v645 = vrot.slane %v282, 3
        %v646 = vsel %vm641, %v643, %v645
        %v647 = vrot.slane %v283, 3
        %v648 = vsel %vm641, %v645, %v647
        %v649 = vrot.slane %v284, 3
        %v650 = vrot.slane %v285, 3
        %v651 = vsel %vm641, %v649, %v650
        %v652 = vrot.slane %v286, 3
        %v653 = vsel %vm641, %v650, %v652
        %v654 = vrot.slane %v287, 3
        %v655 = vsel %vm641, %v652, %v654
        %v656 = vrot.slane %v288, 3
        %v657 = vrot.slane %v289, 3
        %v658 = vsel %vm641, %v656, %v657
        %v659 = vrot.slane %v290, 3
        %v660 = vsel %vm641, %v657, %v659
        %v661 = vrot.slane %v291, 3
        %v662 = vsel %vm641, %v659, %v661
        %v663 = vrot.slane %v292, 3
        %v664 = vrot.slane %v293, 3
        %v665 = vsel %vm641, %v663, %v664
        %v666 = vrot.slane %v294, 3
        %v667 = vsel %vm641, %v664, %v666
        %v668 = vrot.slane %v295, 3
        %v669 = vsel %vm641, %v666, %v668
        %v682 = vmax.f32 %v629, %v644
        %v683 = vmax.f32 %v630, %v646
        %v684 = vmax.f32 %v631, %v648
        %v685 = vmax.f32 %v632, %v651
        %v686 = vmax.f32 %v633, %v653
        %v687 = vmax.f32 %v634, %v655
        %v688 = vmax.f32 %v635, %v658
        %v689 = vmax.f32 %v636, %v660
        %v690 = vmax.f32 %v637, %v662
        %v691 = vmax.f32 %v638, %v665
        %v692 = vmax.f32 %v639, %v667
        %v693 = vmax.f32 %v640, %v669
        %vm694 = vcmask 1043456
        %v695 = vrot.slane %v280, 4
        %v696 = vrot.slane %v281, 4
        %v697 = vsel %vm694, %v695, %v696
        %v698 = vrot.slane %v282, 4
        %v699 = vsel %vm694, %v696, %v698
        %v700 = vrot.slane %v283, 4
        %v701 = vsel %vm694, %v698, %v700
        %v702 = vrot.slane %v284, 4
        %v703 = vrot.slane %v285, 4
        %v704 = vsel %vm694, %v702, %v703
        %v705 = vrot.slane %v286, 4
        %v706 = vsel %vm694, %v703, %v705
        %v707 = vrot.slane %v287, 4
        %v708 = vsel %vm694, %v705, %v707
        %v709 = vrot.slane %v288, 4
        %v710 = vrot.slane %v289, 4
        %v711 = vsel %vm694, %v709, %v710
        %v712 = vrot.slane %v290, 4
        %v713 = vsel %vm694, %v710, %v712
        %v714 = vrot.slane %v291, 4
        %v715 = vsel %vm694, %v712, %v714
        %v716 = vrot.slane %v292, 4
        %v717 = vrot.slane %v293, 4
        %v718 = vsel %vm694, %v716, %v717
        %v719 = vrot.slane %v294, 4
        %v720 = vsel %vm694, %v717, %v719
        %v721 = vrot.slane %v295, 4
        %v722 = vsel %vm694, %v719, %v721
        %v735 = vmax.f32 %v682, %v697
        %v736 = vmax.f32 %v683, %v699
        %v737 = vmax.f32 %v684, %v701
        %v738 = vmax.f32 %v685, %v704
        %v739 = vmax.f32 %v686, %v706
        %v740 = vmax.f32 %v687, %v708
        %v741 = vmax.f32 %v688, %v711
        %v742 = vmax.f32 %v689, %v713
        %v743 = vmax.f32 %v690, %v715
        %v744 = vmax.f32 %v691, %v718
        %v745 = vmax.f32 %v692, %v720
        %v746 = vmax.f32 %v693, %v722
        %759 = vrot.lane.b32.xlu0 %v735, 127
        %v760 = vpop.permute.xlu0 %759
        %761 = vrot.lane.b32.xlu0 %v736, 127
        %v762 = vpop.permute.xlu0 %761
        %763 = vrot.lane.b32.xlu0 %v737, 127
        %v764 = vpop.permute.xlu0 %763
        %765 = vrot.lane.b32.xlu0 %v738, 127
        %v766 = vpop.permute.xlu0 %765
        %767 = vrot.lane.b32.xlu0 %v739, 127
        %v768 = vpop.permute.xlu0 %767
        %769 = vrot.lane.b32.xlu0 %v740, 127
        %v770 = vpop.permute.xlu0 %769
        %771 = vrot.lane.b32.xlu0 %v741, 127
        %v772 = vpop.permute.xlu0 %771
        %773 = vrot.lane.b32.xlu0 %v742, 127
        %v774 = vpop.permute.xlu0 %773
        %775 = vrot.lane.b32.xlu0 %v743, 127
        %v776 = vpop.permute.xlu0 %775
        %777 = vrot.lane.b32.xlu0 %v744, 127
        %v778 = vpop.permute.xlu0 %777
        %779 = vrot.lane.b32.xlu0 %v745, 127
        %v780 = vpop.permute.xlu0 %779
        %781 = vrot.lane.b32.xlu0 %v746, 127
        %v782 = vpop.permute.xlu0 %781
        %v795 = vmax.f32 %v735, %v760
        %v796 = vmax.f32 %v736, %v762
        %v797 = vmax.f32 %v737, %v764
        %v798 = vmax.f32 %v738, %v766
        %v799 = vmax.f32 %v739, %v768
        %v800 = vmax.f32 %v740, %v770
        %v801 = vmax.f32 %v741, %v772
        %v802 = vmax.f32 %v742, %v774
        %v803 = vmax.f32 %v743, %v776
        %v804 = vmax.f32 %v744, %v778
        %v805 = vmax.f32 %v745, %v780
        %v806 = vmax.f32 %v746, %v782
        %807 = vrot.lane.b32.xlu0 %v735, 126
        %v808 = vpop.permute.xlu0 %807
        %809 = vrot.lane.b32.xlu0 %v736, 126
        %v810 = vpop.permute.xlu0 %809
        %811 = vrot.lane.b32.xlu0 %v737, 126
        %v812 = vpop.permute.xlu0 %811
        %813 = vrot.lane.b32.xlu0 %v738, 126
        %v814 = vpop.permute.xlu0 %813
        %815 = vrot.lane.b32.xlu0 %v739, 126
        %v816 = vpop.permute.xlu0 %815
        %817 = vrot.lane.b32.xlu0 %v740, 126
        %v818 = vpop.permute.xlu0 %817
        %819 = vrot.lane.b32.xlu0 %v741, 126
        %v820 = vpop.permute.xlu0 %819
        %821 = vrot.lane.b32.xlu0 %v742, 126
        %v822 = vpop.permute.xlu0 %821
        %823 = vrot.lane.b32.xlu0 %v743, 126
        %v824 = vpop.permute.xlu0 %823
        %825 = vrot.lane.b32.xlu0 %v744, 126
        %v826 = vpop.permute.xlu0 %825
        %827 = vrot.lane.b32.xlu0 %v745, 126
        %v828 = vpop.permute.xlu0 %827
        %829 = vrot.lane.b32.xlu0 %v746, 126
        %v830 = vpop.permute.xlu0 %829
        %v843 = vmax.f32 %v795, %v808
        %v844 = vmax.f32 %v796, %v810
        %v845 = vmax.f32 %v797, %v812
        %v846 = vmax.f32 %v798, %v814
        %v847 = vmax.f32 %v799, %v816
        %v848 = vmax.f32 %v800, %v818
        %v849 = vmax.f32 %v801, %v820
        %v850 = vmax.f32 %v802, %v822
        %v851 = vmax.f32 %v803, %v824
        %v852 = vmax.f32 %v804, %v826
        %v853 = vmax.f32 %v805, %v828
        %v854 = vmax.f32 %v806, %v830
        %855 = vrot.lane.b32.xlu0 %v735, 125
        %v856 = vpop.permute.xlu0 %855
        %857 = vrot.lane.b32.xlu0 %v736, 125
        %v858 = vpop.permute.xlu0 %857
        %859 = vrot.lane.b32.xlu0 %v737, 125
        %v860 = vpop.permute.xlu0 %859
        %861 = vrot.lane.b32.xlu0 %v738, 125
        %v862 = vpop.permute.xlu0 %861
        %863 = vrot.lane.b32.xlu0 %v739, 125
        %v864 = vpop.permute.xlu0 %863
        %865 = vrot.lane.b32.xlu0 %v740, 125
        %v866 = vpop.permute.xlu0 %865
        %867 = vrot.lane.b32.xlu0 %v741, 125
        %v868 = vpop.permute.xlu0 %867
        %869 = vrot.lane.b32.xlu0 %v742, 125
        %v870 = vpop.permute.xlu0 %869
        %871 = vrot.lane.b32.xlu0 %v743, 125
        %v872 = vpop.permute.xlu0 %871
        %873 = vrot.lane.b32.xlu0 %v744, 125
        %v874 = vpop.permute.xlu0 %873
        %875 = vrot.lane.b32.xlu0 %v745, 125
        %v876 = vpop.permute.xlu0 %875
        %877 = vrot.lane.b32.xlu0 %v746, 125
        %v878 = vpop.permute.xlu0 %877
        %v891 = vmax.f32 %v843, %v856
        %v892 = vmax.f32 %v844, %v858
        %v893 = vmax.f32 %v845, %v860
        %v894 = vmax.f32 %v846, %v862
        %v895 = vmax.f32 %v847, %v864
        %v896 = vmax.f32 %v848, %v866
        %v897 = vmax.f32 %v849, %v868
        %v898 = vmax.f32 %v850, %v870
        %v899 = vmax.f32 %v851, %v872
        %v900 = vmax.f32 %v852, %v874
        %v901 = vmax.f32 %v853, %v876
        %v902 = vmax.f32 %v854, %v878
        %903 = vrot.lane.b32.xlu0 %v735, 124
        %v904 = vpop.permute.xlu0 %903
        %905 = vrot.lane.b32.xlu0 %v736, 124
        %v906 = vpop.permute.xlu0 %905
        %907 = vrot.lane.b32.xlu0 %v737, 124
        %v908 = vpop.permute.xlu0 %907
        %909 = vrot.lane.b32.xlu0 %v738, 124
        %v910 = vpop.permute.xlu0 %909
        %911 = vrot.lane.b32.xlu0 %v739, 124
        %v912 = vpop.permute.xlu0 %911
        %913 = vrot.lane.b32.xlu0 %v740, 124
        %v914 = vpop.permute.xlu0 %913
        %915 = vrot.lane.b32.xlu0 %v741, 124
        %v916 = vpop.permute.xlu0 %915
        %917 = vrot.lane.b32.xlu0 %v742, 124
        %v918 = vpop.permute.xlu0 %917
        %919 = vrot.lane.b32.xlu0 %v743, 124
        %v920 = vpop.permute.xlu0 %919
        %921 = vrot.lane.b32.xlu0 %v744, 124
        %v922 = vpop.permute.xlu0 %921
        %923 = vrot.lane.b32.xlu0 %v745, 124
        %v924 = vpop.permute.xlu0 %923
        %925 = vrot.lane.b32.xlu0 %v746, 124
        %v926 = vpop.permute.xlu0 %925
        %v939 = vmax.f32 %v891, %v904
        %v940 = vmax.f32 %v892, %v906
        %v941 = vmax.f32 %v893, %v908
        %v942 = vmax.f32 %v894, %v910
        %v943 = vmax.f32 %v895, %v912
        %v944 = vmax.f32 %v896, %v914
        %v945 = vmax.f32 %v897, %v916
        %v946 = vmax.f32 %v898, %v918
        %v947 = vmax.f32 %v899, %v920
        %v948 = vmax.f32 %v900, %v922
        %v949 = vmax.f32 %v901, %v924
        %v950 = vmax.f32 %v902, %v926
        %v963 = vrot.slane %v939, 4
        %v964 = vrot.slane %v940, 4
        %v965 = vsel %vm694, %v963, %v964
        %v966 = vrot.slane %v941, 4
        %v967 = vsel %vm694, %v964, %v966
        %v968 = vrot.slane %v942, 4
        %v969 = vrot.slane %v943, 4
        %v970 = vsel %vm694, %v968, %v969
        %v971 = vrot.slane %v944, 4
        %v972 = vsel %vm694, %v969, %v971
        %v973 = vrot.slane %v945, 4
        %v974 = vrot.slane %v946, 4
        %v975 = vsel %vm694, %v973, %v974
        %v976 = vrot.slane %v947, 4
        %v977 = vsel %vm694, %v974, %v976
        %v978 = vrot.slane %v948, 4
        %v979 = vrot.slane %v949, 4
        %v980 = vsel %vm694, %v978, %v979
        %v981 = vrot.slane %v950, 4
        %v982 = vsel %vm694, %v979, %v981
        %983 = vrot.lane.b32.xlu0 %v965, 124
        %v984 = vpop.permute.xlu0 %983
        %985 = vrot.lane.b32.xlu0 %v967, 124
        %v986 = vpop.permute.xlu0 %985
        %987 = vrot.lane.b32.xlu0 %v970, 124
        %v988 = vpop.permute.xlu0 %987
        %989 = vrot.lane.b32.xlu0 %v972, 124
        %v990 = vpop.permute.xlu0 %989
        %991 = vrot.lane.b32.xlu0 %v975, 124
        %v992 = vpop.permute.xlu0 %991
        %993 = vrot.lane.b32.xlu0 %v977, 124
        %v994 = vpop.permute.xlu0 %993
        %995 = vrot.lane.b32.xlu0 %v980, 124
        %v996 = vpop.permute.xlu0 %995
        %997 = vrot.lane.b32.xlu0 %v982, 124
        %v998 = vpop.permute.xlu0 %997
        %v1007 = vcombine.low %v984, %v992
        %v1008 = vcombine.high %v984, %v992
        %v1010 = vunpack.c.l.s4 1983009808
        %v1011 = vunpack.c.0.s8 %v1010
        %v1012 = vlaneseq
        %v1013 = vshrl.u32 %v1012, 7
        %v1014 = vsub.s32 %v1011, %v1013
        %v1015 = vrot.slane %v1007, %v1014
        %v1017 = vunpack.c.l.s4 1983009808
        %v1018 = vunpack.c.0.s8 %v1017
        %v1019 = vlaneseq
        %v1020 = vshrl.u32 %v1019, 7
        %v1021 = vsub.s32 %v1018, %v1020
        %v1022 = vrot.slane %v1008, %v1021
        %v1023 = vcombine.low %v988, %v996
        %v1024 = vcombine.high %v988, %v996
        %v1026 = vunpack.c.l.s4 1983009808
        %v1027 = vunpack.c.0.s8 %v1026
        %v1028 = vlaneseq
        %v1029 = vshrl.u32 %v1028, 7
        %v1030 = vsub.s32 %v1027, %v1029
        %v1031 = vrot.slane %v1023, %v1030
        %v1033 = vunpack.c.l.s4 1983009808
        %v1034 = vunpack.c.0.s8 %v1033
        %v1035 = vlaneseq
        %v1036 = vshrl.u32 %v1035, 7
        %v1037 = vsub.s32 %v1034, %v1036
        %v1038 = vrot.slane %v1024, %v1037
        %v1039 = vcombine.low %v1015, %v1031
        %v1040 = vcombine.high %v1015, %v1031
        %v1042 = vunpack.c.l.s4 1934713408
        %v1043 = vunpack.c.0.s8 %v1042
        %v1044 = vlaneseq
        %v1045 = vshrl.u32 %v1044, 7
        %v1046 = vsub.s32 %v1043, %v1045
        %v1047 = vrot.slane %v1039, %v1046
        %v1049 = vunpack.c.l.s4 1934713408
        %v1050 = vunpack.c.0.s8 %v1049
        %v1051 = vlaneseq
        %v1052 = vshrl.u32 %v1051, 7
        %v1053 = vsub.s32 %v1050, %v1052
        %v1054 = vrot.slane %v1040, %v1053
        %v1055 = vcombine.low %v1022, %v1038
        %v1056 = vcombine.high %v1022, %v1038
        %v1058 = vunpack.c.l.s4 1934713408
        %v1059 = vunpack.c.0.s8 %v1058
        %v1060 = vlaneseq
        %v1061 = vshrl.u32 %v1060, 7
        %v1062 = vsub.s32 %v1059, %v1061
        %v1063 = vrot.slane %v1055, %v1062
        %v1065 = vunpack.c.l.s4 1934713408
        %v1066 = vunpack.c.0.s8 %v1065
        %v1067 = vlaneseq
        %v1068 = vshrl.u32 %v1067, 7
        %v1069 = vsub.s32 %v1066, %v1068
        %v1070 = vrot.slane %v1056, %v1069
        %v1071 = vcombine.high %v1047, 0.0
        %v1072 = vcombine.high %v1054, 0.0
        %v1073 = vcombine.high %v1063, 0.0
        %v1074 = vcombine.high %v1070, 0.0
        %v1075 = vcombine.low %v986, %v994
        %v1076 = vcombine.high %v986, %v994
        %v1078 = vunpack.c.l.s4 1983009808
        %v1079 = vunpack.c.0.s8 %v1078
        %v1080 = vlaneseq
        %v1081 = vshrl.u32 %v1080, 7
        %v1082 = vsub.s32 %v1079, %v1081
        %v1083 = vrot.slane %v1075, %v1082
        %v1085 = vunpack.c.l.s4 1983009808
        %v1086 = vunpack.c.0.s8 %v1085
        %v1087 = vlaneseq
        %v1088 = vshrl.u32 %v1087, 7
        %v1089 = vsub.s32 %v1086, %v1088
        %v1090 = vrot.slane %v1076, %v1089
        %v1091 = vcombine.low %v990, %v998
        %v1092 = vcombine.high %v990, %v998
        %v1094 = vunpack.c.l.s4 1983009808
        %v1095 = vunpack.c.0.s8 %v1094
        %v1096 = vlaneseq
        %v1097 = vshrl.u32 %v1096, 7
        %v1098 = vsub.s32 %v1095, %v1097
        %v1099 = vrot.slane %v1091, %v1098
        %v1101 = vunpack.c.l.s4 1983009808
        %v1102 = vunpack.c.0.s8 %v1101
        %v1103 = vlaneseq
        %v1104 = vshrl.u32 %v1103, 7
        %v1105 = vsub.s32 %v1102, %v1104
        %v1106 = vrot.slane %v1092, %v1105
        %v1107 = vcombine.low %v1083, %v1099
        %v1108 = vcombine.high %v1083, %v1099
        %v1110 = vunpack.c.l.s4 1934713408
        %v1111 = vunpack.c.0.s8 %v1110
        %v1112 = vlaneseq
        %v1113 = vshrl.u32 %v1112, 7
        %v1114 = vsub.s32 %v1111, %v1113
        %v1115 = vrot.slane %v1107, %v1114
        %v1117 = vunpack.c.l.s4 1934713408
        %v1118 = vunpack.c.0.s8 %v1117
        %v1119 = vlaneseq
        %v1120 = vshrl.u32 %v1119, 7
        %v1121 = vsub.s32 %v1118, %v1120
        %v1122 = vrot.slane %v1108, %v1121
        %v1123 = vcombine.low %v1090, %v1106
        %v1124 = vcombine.high %v1090, %v1106
        %v1126 = vunpack.c.l.s4 1934713408
        %v1127 = vunpack.c.0.s8 %v1126
        %v1128 = vlaneseq
        %v1129 = vshrl.u32 %v1128, 7
        %v1130 = vsub.s32 %v1127, %v1129
        %v1131 = vrot.slane %v1123, %v1130
        %v1133 = vunpack.c.l.s4 1934713408
        %v1134 = vunpack.c.0.s8 %v1133
        %v1135 = vlaneseq
        %v1136 = vshrl.u32 %v1135, 7
        %v1137 = vsub.s32 %v1134, %v1136
        %v1138 = vrot.slane %v1124, %v1137
        %v1139 = vcombine.high %v1115, 0.0
        %v1140 = vcombine.high %v1122, 0.0
        %v1141 = vcombine.high %v1131, 0.0
        %v1142 = vcombine.high %v1138, 0.0
        %1144 = vrot.lane.b32.xlu0 %v1071, 16
        %v1145 = vpop.permute.xlu0 %1144
        %1148 = vrot.lane.b32.xlu0 %v1054, 32
        %v1149 = vpop.permute.xlu0 %1148
        %1152 = vrot.lane.b32.xlu0 %v1072, 48
        %v1153 = vpop.permute.xlu0 %1152
        %1156 = vrot.lane.b32.xlu0 %v1063, 64
        %v1157 = vpop.permute.xlu0 %1156
        %1160 = vrot.lane.b32.xlu0 %v1073, 80
        %v1161 = vpop.permute.xlu0 %1160
        %1164 = vrot.lane.b32.xlu0 %v1070, 96
        %v1165 = vpop.permute.xlu0 %1164
        %1168 = vrot.lane.b32.xlu0 %v1074, 112
        %v1169 = vpop.permute.xlu0 %1168
        %1172 = vrot.lane.b32.xlu0 %v1139, 16
        %v1173 = vpop.permute.xlu0 %1172
        %1176 = vrot.lane.b32.xlu0 %v1122, 32
        %v1177 = vpop.permute.xlu0 %1176
        %1180 = vrot.lane.b32.xlu0 %v1140, 48
        %v1181 = vpop.permute.xlu0 %1180
        %1184 = vrot.lane.b32.xlu0 %v1131, 64
        %v1185 = vpop.permute.xlu0 %1184
        %1188 = vrot.lane.b32.xlu0 %v1141, 80
        %v1189 = vpop.permute.xlu0 %1188
        %1192 = vrot.lane.b32.xlu0 %v1138, 96
        %v1193 = vpop.permute.xlu0 %1192
        %1196 = vrot.lane.b32.xlu0 %v1142, 112
        %v1197 = vpop.permute.xlu0 %1196
        %v1199 = vsel %vm496, %v1047, %v1145
        %v1200 = vsel %vm498, %v1199, %v1149
        %v1201 = vsel %vm500, %v1200, %v1153
        %v1202 = vsel %vm502, %v1201, %v1157
        %v1203 = vsel %vm504, %v1202, %v1161
        %v1204 = vsel %vm506, %v1203, %v1165
        %v1205 = vsel %vm508, %v1204, %v1169
        %v1206 = vsel %vm496, %v1115, %v1173
        %v1207 = vsel %vm498, %v1206, %v1177
        %v1208 = vsel %vm500, %v1207, %v1181
        %v1209 = vsel %vm502, %v1208, %v1185
        %v1210 = vsel %vm504, %v1209, %v1189
        %v1211 = vsel %vm506, %v1210, %v1193
        %v1212 = vsel %vm508, %v1211, %v1197
        %v1215 = vrot.slane %v1205, 4
        %v1216 = vrot.slane %v1212, 4
        %1219 = vst [vmem:[#allocation3] sm:$0xf0] %v1215
        %1220 = vst [vmem:[#allocation3 + $0x8] sm:$0xf0] %v1216
        %v1221 = vrot.slane %v939, 1
        %v1222 = vrot.slane %v940, 1
        %v1223 = vsel %vm535, %v1221, %v1222
        %v1224 = vrot.slane %v941, 1
        %v1225 = vsel %vm535, %v1222, %v1224
        %v1226 = vrot.slane %v942, 1
        %v1227 = vrot.slane %v943, 1
        %v1228 = vsel %vm535, %v1226, %v1227
        %v1229 = vrot.slane %v944, 1
        %v1230 = vsel %vm535, %v1227, %v1229
        %v1231 = vrot.slane %v945, 1
        %v1232 = vrot.slane %v946, 1
        %v1233 = vsel %vm535, %v1231, %v1232
        %v1234 = vrot.slane %v947, 1
        %v1235 = vsel %vm535, %v1232, %v1234
        %v1236 = vrot.slane %v948, 1
        %v1237 = vrot.slane %v949, 1
        %v1238 = vsel %vm535, %v1236, %v1237
        %v1239 = vrot.slane %v950, 1
        %v1240 = vsel %vm535, %v1237, %v1239
        %v1253 = vmax.f32 %v939, %v1223
        %v1254 = vmax.f32 %v940, %v1225
        %v1255 = vmax.f32 %v941, %v1224
        %v1256 = vmax.f32 %v942, %v1228
        %v1257 = vmax.f32 %v943, %v1230
        %v1258 = vmax.f32 %v944, %v1229
        %v1259 = vmax.f32 %v945, %v1233
        %v1260 = vmax.f32 %v946, %v1235
        %v1261 = vmax.f32 %v947, %v1234
        %v1262 = vmax.f32 %v948, %v1238
        %v1263 = vmax.f32 %v949, %v1240
        %v1264 = vmax.f32 %v950, %v1239
        %v1265 = vrot.slane %v939, 2
        %v1266 = vrot.slane %v940, 2
        %v1267 = vsel %vm588, %v1265, %v1266
        %v1268 = vrot.slane %v941, 2
        %v1269 = vsel %vm588, %v1266, %v1268
        %v1270 = vrot.slane %v942, 2
        %v1271 = vrot.slane %v943, 2
        %v1272 = vsel %vm588, %v1270, %v1271
        %v1273 = vrot.slane %v944, 2
        %v1274 = vsel %vm588, %v1271, %v1273
        %v1275 = vrot.slane %v945, 2
        %v1276 = vrot.slane %v946, 2
        %v1277 = vsel %vm588, %v1275, %v1276
        %v1278 = vrot.slane %v947, 2
        %v1279 = vsel %vm588, %v1276, %v1278
        %v1280 = vrot.slane %v948, 2
        %v1281 = vrot.slane %v949, 2
        %v1282 = vsel %vm588, %v1280, %v1281
        %v1283 = vrot.slane %v950, 2
        %v1284 = vsel %vm588, %v1281, %v1283
        %v1297 = vmax.f32 %v1253, %v1267
        %v1298 = vmax.f32 %v1254, %v1269
        %v1299 = vmax.f32 %v1255, %v1268
        %v1300 = vmax.f32 %v1256, %v1272
        %v1301 = vmax.f32 %v1257, %v1274
        %v1302 = vmax.f32 %v1258, %v1273
        %v1303 = vmax.f32 %v1259, %v1277
        %v1304 = vmax.f32 %v1260, %v1279
        %v1305 = vmax.f32 %v1261, %v1278
        %v1306 = vmax.f32 %v1262, %v1282
        %v1307 = vmax.f32 %v1263, %v1284
        %v1308 = vmax.f32 %v1264, %v1283
        %v1309 = vrot.slane %v939, 3
        %v1310 = vrot.slane %v940, 3
        %v1311 = vsel %vm641, %v1309, %v1310
        %v1312 = vrot.slane %v941, 3
        %v1313 = vsel %vm641, %v1310, %v1312
        %v1314 = vrot.slane %v942, 3
        %v1315 = vrot.slane %v943, 3
        %v1316 = vsel %vm641, %v1314, %v1315
        %v1317 = vrot.slane %v944, 3
        %v1318 = vsel %vm641, %v1315, %v1317
        %v1319 = vrot.slane %v945, 3
        %v1320 = vrot.slane %v946, 3
        %v1321 = vsel %vm641, %v1319, %v1320
        %v1322 = vrot.slane %v947, 3
        %v1323 = vsel %vm641, %v1320, %v1322
        %v1324 = vrot.slane %v948, 3
        %v1325 = vrot.slane %v949, 3
        %v1326 = vsel %vm641, %v1324, %v1325
        %v1327 = vrot.slane %v950, 3
        %v1328 = vsel %vm641, %v1325, %v1327
        %v1341 = vmax.f32 %v1297, %v1311
        %v1342 = vmax.f32 %v1298, %v1313
        %v1343 = vmax.f32 %v1299, %v1312
        %v1344 = vmax.f32 %v1300, %v1316
        %v1345 = vmax.f32 %v1301, %v1318
        %v1346 = vmax.f32 %v1302, %v1317
        %v1347 = vmax.f32 %v1303, %v1321
        %v1348 = vmax.f32 %v1304, %v1323
        %v1349 = vmax.f32 %v1305, %v1322
        %v1350 = vmax.f32 %v1306, %v1326
        %v1351 = vmax.f32 %v1307, %v1328
        %v1352 = vmax.f32 %v1308, %v1327
        %v1365 = vmax.f32 %v1341, %v965
        %v1366 = vmax.f32 %v1342, %v967
        %v1367 = vmax.f32 %v1343, %v966
        %v1368 = vmax.f32 %v1344, %v970
        %v1369 = vmax.f32 %v1345, %v972
        %v1370 = vmax.f32 %v1346, %v971
        %v1371 = vmax.f32 %v1347, %v975
        %v1372 = vmax.f32 %v1348, %v977
        %v1373 = vmax.f32 %v1349, %v976
        %v1374 = vmax.f32 %v1350, %v980
        %v1375 = vmax.f32 %v1351, %v982
        %v1376 = vmax.f32 %v1352, %v981
        %1389 = vrot.lane.b32.xlu0 %v1365, 127
        %v1390 = vpop.permute.xlu0 %1389
        %1391 = vrot.lane.b32.xlu0 %v1366, 127
        %v1392 = vpop.permute.xlu0 %1391
        %1393 = vrot.lane.b32.xlu0 %v1367, 127
        %v1394 = vpop.permute.xlu0 %1393
        %1395 = vrot.lane.b32.xlu0 %v1368, 127
        %v1396 = vpop.permute.xlu0 %1395
        %1397 = vrot.lane.b32.xlu0 %v1369, 127
        %v1398 = vpop.permute.xlu0 %1397
        %1399 = vrot.lane.b32.xlu0 %v1370, 127
        %v1400 = vpop.permute.xlu0 %1399
        %1401 = vrot.lane.b32.xlu0 %v1371, 127
        %v1402 = vpop.permute.xlu0 %1401
        %1403 = vrot.lane.b32.xlu0 %v1372, 127
        %v1404 = vpop.permute.xlu0 %1403
        %1405 = vrot.lane.b32.xlu0 %v1373, 127
        %v1406 = vpop.permute.xlu0 %1405
        %1407 = vrot.lane.b32.xlu0 %v1374, 127
        %v1408 = vpop.permute.xlu0 %1407
        %1409 = vrot.lane.b32.xlu0 %v1375, 127
        %v1410 = vpop.permute.xlu0 %1409
        %1411 = vrot.lane.b32.xlu0 %v1376, 127
        %v1412 = vpop.permute.xlu0 %1411
        %v1425 = vmax.f32 %v1365, %v1390
        %v1426 = vmax.f32 %v1366, %v1392
        %v1427 = vmax.f32 %v1367, %v1394
        %v1428 = vmax.f32 %v1368, %v1396
        %v1429 = vmax.f32 %v1369, %v1398
        %v1430 = vmax.f32 %v1370, %v1400
        %v1431 = vmax.f32 %v1371, %v1402
        %v1432 = vmax.f32 %v1372, %v1404
        %v1433 = vmax.f32 %v1373, %v1406
        %v1434 = vmax.f32 %v1374, %v1408
        %v1435 = vmax.f32 %v1375, %v1410
        %v1436 = vmax.f32 %v1376, %v1412
        %1437 = vrot.lane.b32.xlu0 %v1365, 126
        %v1438 = vpop.permute.xlu0 %1437
        %1439 = vrot.lane.b32.xlu0 %v1366, 126
        %v1440 = vpop.permute.xlu0 %1439
        %1441 = vrot.lane.b32.xlu0 %v1367, 126
        %v1442 = vpop.permute.xlu0 %1441
        %1443 = vrot.lane.b32.xlu0 %v1368, 126
        %v1444 = vpop.permute.xlu0 %1443
        %1445 = vrot.lane.b32.xlu0 %v1369, 126
        %v1446 = vpop.permute.xlu0 %1445
        %1447 = vrot.lane.b32.xlu0 %v1370, 126
        %v1448 = vpop.permute.xlu0 %1447
        %1449 = vrot.lane.b32.xlu0 %v1371, 126
        %v1450 = vpop.permute.xlu0 %1449
        %1451 = vrot.lane.b32.xlu0 %v1372, 126
        %v1452 = vpop.permute.xlu0 %1451
        %1453 = vrot.lane.b32.xlu0 %v1373, 126
        %v1454 = vpop.permute.xlu0 %1453
        %1455 = vrot.lane.b32.xlu0 %v1374, 126
        %v1456 = vpop.permute.xlu0 %1455
        %1457 = vrot.lane.b32.xlu0 %v1375, 126
        %v1458 = vpop.permute.xlu0 %1457
        %1459 = vrot.lane.b32.xlu0 %v1376, 126
        %v1460 = vpop.permute.xlu0 %1459
        %v1473 = vmax.f32 %v1425, %v1438
        %v1474 = vmax.f32 %v1426, %v1440
        %v1475 = vmax.f32 %v1427, %v1442
        %v1476 = vmax.f32 %v1428, %v1444
        %v1477 = vmax.f32 %v1429, %v1446
        %v1478 = vmax.f32 %v1430, %v1448
        %v1479 = vmax.f32 %v1431, %v1450
        %v1480 = vmax.f32 %v1432, %v1452
        %v1481 = vmax.f32 %v1433, %v1454
        %v1482 = vmax.f32 %v1434, %v1456
        %v1483 = vmax.f32 %v1435, %v1458
        %v1484 = vmax.f32 %v1436, %v1460
        %1485 = vrot.lane.b32.xlu0 %v1365, 125
        %v1486 = vpop.permute.xlu0 %1485
        %1487 = vrot.lane.b32.xlu0 %v1366, 125
        %v1488 = vpop.permute.xlu0 %1487
        %1489 = vrot.lane.b32.xlu0 %v1367, 125
        %v1490 = vpop.permute.xlu0 %1489
        %1491 = vrot.lane.b32.xlu0 %v1368, 125
        %v1492 = vpop.permute.xlu0 %1491
        %1493 = vrot.lane.b32.xlu0 %v1369, 125
        %v1494 = vpop.permute.xlu0 %1493
        %1495 = vrot.lane.b32.xlu0 %v1370, 125
        %v1496 = vpop.permute.xlu0 %1495
        %1497 = vrot.lane.b32.xlu0 %v1371, 125
        %v1498 = vpop.permute.xlu0 %1497
        %1499 = vrot.lane.b32.xlu0 %v1372, 125
        %v1500 = vpop.permute.xlu0 %1499
        %1501 = vrot.lane.b32.xlu0 %v1373, 125
        %v1502 = vpop.permute.xlu0 %1501
        %1503 = vrot.lane.b32.xlu0 %v1374, 125
        %v1504 = vpop.permute.xlu0 %1503
        %1505 = vrot.lane.b32.xlu0 %v1375, 125
        %v1506 = vpop.permute.xlu0 %1505
        %1507 = vrot.lane.b32.xlu0 %v1376, 125
        %v1508 = vpop.permute.xlu0 %1507
        %v1521 = vmax.f32 %v1473, %v1486
        %v1522 = vmax.f32 %v1474, %v1488
        %v1523 = vmax.f32 %v1475, %v1490
        %v1524 = vmax.f32 %v1476, %v1492
        %v1525 = vmax.f32 %v1477, %v1494
        %v1526 = vmax.f32 %v1478, %v1496
        %v1527 = vmax.f32 %v1479, %v1498
        %v1528 = vmax.f32 %v1480, %v1500
        %v1529 = vmax.f32 %v1481, %v1502
        %v1530 = vmax.f32 %v1482, %v1504
        %v1531 = vmax.f32 %v1483, %v1506
        %v1532 = vmax.f32 %v1484, %v1508
        %1533 = vrot.lane.b32.xlu0 %v1365, 124
        %v1534 = vpop.permute.xlu0 %1533
        %1535 = vrot.lane.b32.xlu0 %v1366, 124
        %v1536 = vpop.permute.xlu0 %1535
        %1537 = vrot.lane.b32.xlu0 %v1367, 124
        %v1538 = vpop.permute.xlu0 %1537
        %1539 = vrot.lane.b32.xlu0 %v1368, 124
        %v1540 = vpop.permute.xlu0 %1539
        %1541 = vrot.lane.b32.xlu0 %v1369, 124
        %v1542 = vpop.permute.xlu0 %1541
        %1543 = vrot.lane.b32.xlu0 %v1370, 124
        %v1544 = vpop.permute.xlu0 %1543
        %1545 = vrot.lane.b32.xlu0 %v1371, 124
        %v1546 = vpop.permute.xlu0 %1545
        %1547 = vrot.lane.b32.xlu0 %v1372, 124
        %v1548 = vpop.permute.xlu0 %1547
        %1549 = vrot.lane.b32.xlu0 %v1373, 124
        %v1550 = vpop.permute.xlu0 %1549
        %1551 = vrot.lane.b32.xlu0 %v1374, 124
        %v1552 = vpop.permute.xlu0 %1551
        %1553 = vrot.lane.b32.xlu0 %v1375, 124
        %v1554 = vpop.permute.xlu0 %1553
        %1555 = vrot.lane.b32.xlu0 %v1376, 124
        %v1556 = vpop.permute.xlu0 %1555
        %v1569 = vmax.f32 %v1521, %v1534
        %v1570 = vmax.f32 %v1522, %v1536
        %v1571 = vmax.f32 %v1523, %v1538
        %v1572 = vmax.f32 %v1524, %v1540
        %v1573 = vmax.f32 %v1525, %v1542
        %v1574 = vmax.f32 %v1526, %v1544
        %v1575 = vmax.f32 %v1527, %v1546
        %v1576 = vmax.f32 %v1528, %v1548
        %v1577 = vmax.f32 %v1529, %v1550
        %v1578 = vmax.f32 %v1530, %v1552
        %v1579 = vmax.f32 %v1531, %v1554
        %v1580 = vmax.f32 %v1532, %v1556
        %v1593 = vrot.slane %v1569, 2
        %v1594 = vrot.slane %v1570, 2
        %v1595 = vsel %vm588, %v1593, %v1594
        %v1596 = vrot.slane %v1571, 2
        %v1597 = vsel %vm588, %v1594, %v1596
        %v1598 = vrot.slane %v1572, 2
        %v1599 = vrot.slane %v1573, 2
        %v1600 = vsel %vm588, %v1598, %v1599
        %v1601 = vrot.slane %v1574, 2
        %v1602 = vsel %vm588, %v1599, %v1601
        %v1603 = vrot.slane %v1575, 2
        %v1604 = vrot.slane %v1576, 2
        %v1605 = vsel %vm588, %v1603, %v1604
        %v1606 = vrot.slane %v1577, 2
        %v1607 = vsel %vm588, %v1604, %v1606
        %v1608 = vrot.slane %v1578, 2
        %v1609 = vrot.slane %v1579, 2
        %v1610 = vsel %vm588, %v1608, %v1609
        %v1611 = vrot.slane %v1580, 2
        %v1612 = vsel %vm588, %v1609, %v1611
        %1613 = vrot.lane.b32.xlu0 %v1595, 126
        %v1614 = vpop.permute.xlu0 %1613
        %1615 = vrot.lane.b32.xlu0 %v1597, 126
        %v1616 = vpop.permute.xlu0 %1615
        %1617 = vrot.lane.b32.xlu0 %v1600, 126
        %v1618 = vpop.permute.xlu0 %1617
        %1619 = vrot.lane.b32.xlu0 %v1602, 126
        %v1620 = vpop.permute.xlu0 %1619
        %1621 = vrot.lane.b32.xlu0 %v1605, 126
        %v1622 = vpop.permute.xlu0 %1621
        %1623 = vrot.lane.b32.xlu0 %v1607, 126
        %v1624 = vpop.permute.xlu0 %1623
        %1625 = vrot.lane.b32.xlu0 %v1610, 126
        %v1626 = vpop.permute.xlu0 %1625
        %1627 = vrot.lane.b32.xlu0 %v1612, 126
        %v1628 = vpop.permute.xlu0 %1627
        %v1637 = vcombine.low %v1614, %v1622
        %v1638 = vcombine.high %v1614, %v1622
        %v1640 = vunpack.c.l.s4 1983009808
        %v1641 = vunpack.c.0.s8 %v1640
        %v1642 = vlaneseq
        %v1643 = vshrl.u32 %v1642, 7
        %v1644 = vsub.s32 %v1641, %v1643
        %v1645 = vrot.slane %v1637, %v1644
        %v1647 = vunpack.c.l.s4 1983009808
        %v1648 = vunpack.c.0.s8 %v1647
        %v1649 = vlaneseq
        %v1650 = vshrl.u32 %v1649, 7
        %v1651 = vsub.s32 %v1648, %v1650
        %v1652 = vrot.slane %v1638, %v1651
        %v1653 = vcombine.low %v1618, %v1626
        %v1654 = vcombine.high %v1618, %v1626
        %v1656 = vunpack.c.l.s4 1983009808
        %v1657 = vunpack.c.0.s8 %v1656
        %v1658 = vlaneseq
        %v1659 = vshrl.u32 %v1658, 7
        %v1660 = vsub.s32 %v1657, %v1659
        %v1661 = vrot.slane %v1653, %v1660
        %v1663 = vunpack.c.l.s4 1983009808
        %v1664 = vunpack.c.0.s8 %v1663
        %v1665 = vlaneseq
        %v1666 = vshrl.u32 %v1665, 7
        %v1667 = vsub.s32 %v1664, %v1666
        %v1668 = vrot.slane %v1654, %v1667
        %v1669 = vcombine.low %v1645, %v1661
        %v1670 = vcombine.high %v1645, %v1661
        %v1672 = vunpack.c.l.s4 1934713408
        %v1673 = vunpack.c.0.s8 %v1672
        %v1674 = vlaneseq
        %v1675 = vshrl.u32 %v1674, 7
        %v1676 = vsub.s32 %v1673, %v1675
        %v1677 = vrot.slane %v1669, %v1676
        %v1679 = vunpack.c.l.s4 1934713408
        %v1680 = vunpack.c.0.s8 %v1679
        %v1681 = vlaneseq
        %v1682 = vshrl.u32 %v1681, 7
        %v1683 = vsub.s32 %v1680, %v1682
        %v1684 = vrot.slane %v1670, %v1683
        %v1685 = vcombine.low %v1652, %v1668
        %v1686 = vcombine.high %v1652, %v1668
        %v1688 = vunpack.c.l.s4 1934713408
        %v1689 = vunpack.c.0.s8 %v1688
        %v1690 = vlaneseq
        %v1691 = vshrl.u32 %v1690, 7
        %v1692 = vsub.s32 %v1689, %v1691
        %v1693 = vrot.slane %v1685, %v1692
        %v1695 = vunpack.c.l.s4 1934713408
        %v1696 = vunpack.c.0.s8 %v1695
        %v1697 = vlaneseq
        %v1698 = vshrl.u32 %v1697, 7
        %v1699 = vsub.s32 %v1696, %v1698
        %v1700 = vrot.slane %v1686, %v1699
        %v1701 = vcombine.high %v1677, 0.0
        %v1702 = vcombine.high %v1684, 0.0
        %v1703 = vcombine.high %v1693, 0.0
        %v1704 = vcombine.high %v1700, 0.0
        %v1705 = vcombine.low %v1616, %v1624
        %v1706 = vcombine.high %v1616, %v1624
        %v1708 = vunpack.c.l.s4 1983009808
        %v1709 = vunpack.c.0.s8 %v1708
        %v1710 = vlaneseq
        %v1711 = vshrl.u32 %v1710, 7
        %v1712 = vsub.s32 %v1709, %v1711
        %v1713 = vrot.slane %v1705, %v1712
        %v1715 = vunpack.c.l.s4 1983009808
        %v1716 = vunpack.c.0.s8 %v1715
        %v1717 = vlaneseq
        %v1718 = vshrl.u32 %v1717, 7
        %v1719 = vsub.s32 %v1716, %v1718
        %v1720 = vrot.slane %v1706, %v1719
        %v1721 = vcombine.low %v1620, %v1628
        %v1722 = vcombine.high %v1620, %v1628
        %v1724 = vunpack.c.l.s4 1983009808
        %v1725 = vunpack.c.0.s8 %v1724
        %v1726 = vlaneseq
        %v1727 = vshrl.u32 %v1726, 7
        %v1728 = vsub.s32 %v1725, %v1727
        %v1729 = vrot.slane %v1721, %v1728
        %v1731 = vunpack.c.l.s4 1983009808
        %v1732 = vunpack.c.0.s8 %v1731
        %v1733 = vlaneseq
        %v1734 = vshrl.u32 %v1733, 7
        %v1735 = vsub.s32 %v1732, %v1734
        %v1736 = vrot.slane %v1722, %v1735
        %v1737 = vcombine.low %v1713, %v1729
        %v1738 = vcombine.high %v1713, %v1729
        %v1740 = vunpack.c.l.s4 1934713408
        %v1741 = vunpack.c.0.s8 %v1740
        %v1742 = vlaneseq
        %v1743 = vshrl.u32 %v1742, 7
        %v1744 = vsub.s32 %v1741, %v1743
        %v1745 = vrot.slane %v1737, %v1744
        %v1747 = vunpack.c.l.s4 1934713408
        %v1748 = vunpack.c.0.s8 %v1747
        %v1749 = vlaneseq
        %v1750 = vshrl.u32 %v1749, 7
        %v1751 = vsub.s32 %v1748, %v1750
        %v1752 = vrot.slane %v1738, %v1751
        %v1753 = vcombine.low %v1720, %v1736
        %v1754 = vcombine.high %v1720, %v1736
        %v1756 = vunpack.c.l.s4 1934713408
        %v1757 = vunpack.c.0.s8 %v1756
        %v1758 = vlaneseq
        %v1759 = vshrl.u32 %v1758, 7
        %v1760 = vsub.s32 %v1757, %v1759
        %v1761 = vrot.slane %v1753, %v1760
        %v1763 = vunpack.c.l.s4 1934713408
        %v1764 = vunpack.c.0.s8 %v1763
        %v1765 = vlaneseq
        %v1766 = vshrl.u32 %v1765, 7
        %v1767 = vsub.s32 %v1764, %v1766
        %v1768 = vrot.slane %v1754, %v1767
        %v1769 = vcombine.high %v1745, 0.0
        %v1770 = vcombine.high %v1752, 0.0
        %v1771 = vcombine.high %v1761, 0.0
        %v1772 = vcombine.high %v1768, 0.0
        %1774 = vrot.lane.b32.xlu0 %v1701, 16
        %v1775 = vpop.permute.xlu0 %1774
        %1778 = vrot.lane.b32.xlu0 %v1684, 32
        %v1779 = vpop.permute.xlu0 %1778
        %1782 = vrot.lane.b32.xlu0 %v1702, 48
        %v1783 = vpop.permute.xlu0 %1782
        %1786 = vrot.lane.b32.xlu0 %v1693, 64
        %v1787 = vpop.permute.xlu0 %1786
        %1790 = vrot.lane.b32.xlu0 %v1703, 80
        %v1791 = vpop.permute.xlu0 %1790
        %1794 = vrot.lane.b32.xlu0 %v1700, 96
        %v1795 = vpop.permute.xlu0 %1794
        %1798 = vrot.lane.b32.xlu0 %v1704, 112
        %v1799 = vpop.permute.xlu0 %1798
        %1802 = vrot.lane.b32.xlu0 %v1769, 16
        %v1803 = vpop.permute.xlu0 %1802
        %1806 = vrot.lane.b32.xlu0 %v1752, 32
        %v1807 = vpop.permute.xlu0 %1806
        %1810 = vrot.lane.b32.xlu0 %v1770, 48
        %v1811 = vpop.permute.xlu0 %1810
        %1814 = vrot.lane.b32.xlu0 %v1761, 64
        %v1815 = vpop.permute.xlu0 %1814
        %1818 = vrot.lane.b32.xlu0 %v1771, 80
        %v1819 = vpop.permute.xlu0 %1818
        %1822 = vrot.lane.b32.xlu0 %v1768, 96
        %v1823 = vpop.permute.xlu0 %1822
        %1826 = vrot.lane.b32.xlu0 %v1772, 112
        %v1827 = vpop.permute.xlu0 %1826
        %v1829 = vsel %vm496, %v1677, %v1775
        %v1830 = vsel %vm498, %v1829, %v1779
        %v1831 = vsel %vm500, %v1830, %v1783
        %v1832 = vsel %vm502, %v1831, %v1787
        %v1833 = vsel %vm504, %v1832, %v1791
        %v1834 = vsel %vm506, %v1833, %v1795
        %v1835 = vsel %vm508, %v1834, %v1799
        %v1836 = vsel %vm496, %v1745, %v1803
        %v1837 = vsel %vm498, %v1836, %v1807
        %v1838 = vsel %vm500, %v1837, %v1811
        %v1839 = vsel %vm502, %v1838, %v1815
        %v1840 = vsel %vm504, %v1839, %v1819
        %v1841 = vsel %vm506, %v1840, %v1823
        %v1842 = vsel %vm508, %v1841, %v1827
        %1843 = vst [vmem:[#allocation3 + $0x10] sm:$0xf] %v1835
        %1844 = vst [vmem:[#allocation3 + $0x18] sm:$0xf] %v1842
        %v1845 = vrot.slane %v1569, 1
        %v1846 = vrot.slane %v1570, 1
        %v1847 = vsel %vm535, %v1845, %v1846
        %v1848 = vrot.slane %v1571, 1
        %v1849 = vsel %vm535, %v1846, %v1848
        %v1850 = vrot.slane %v1572, 1
        %v1851 = vrot.slane %v1573, 1
        %v1852 = vsel %vm535, %v1850, %v1851
        %v1853 = vrot.slane %v1574, 1
        %v1854 = vsel %vm535, %v1851, %v1853
        %v1855 = vrot.slane %v1575, 1
        %v1856 = vrot.slane %v1576, 1
        %v1857 = vsel %vm535, %v1855, %v1856
        %v1858 = vrot.slane %v1577, 1
        %v1859 = vsel %vm535, %v1856, %v1858
        %v1860 = vrot.slane %v1578, 1
        %v1861 = vrot.slane %v1579, 1
        %v1862 = vsel %vm535, %v1860, %v1861
        %v1863 = vrot.slane %v1580, 1
        %v1864 = vsel %vm535, %v1861, %v1863
        %v1873 = vmax.f32 %v1569, %v1847
        %v1874 = vmax.f32 %v1570, %v1849
        %v1875 = vmax.f32 %v1572, %v1852
        %v1876 = vmax.f32 %v1573, %v1854
        %v1877 = vmax.f32 %v1575, %v1857
        %v1878 = vmax.f32 %v1576, %v1859
        %v1879 = vmax.f32 %v1578, %v1862
        %v1880 = vmax.f32 %v1579, %v1864
        %v1889 = vmax.f32 %v1873, %v1595
        %v1890 = vmax.f32 %v1874, %v1597
        %v1891 = vmax.f32 %v1875, %v1600
        %v1892 = vmax.f32 %v1876, %v1602
        %v1893 = vmax.f32 %v1877, %v1605
        %v1894 = vmax.f32 %v1878, %v1607
        %v1895 = vmax.f32 %v1879, %v1610
        %v1896 = vmax.f32 %v1880, %v1612
        %v1897 = vrot.slane %v1569, 3
        %v1898 = vrot.slane %v1570, 3
        %v1899 = vsel %vm641, %v1897, %v1898
        %v1900 = vrot.slane %v1571, 3
        %v1901 = vsel %vm641, %v1898, %v1900
        %v1902 = vrot.slane %v1572, 3
        %v1903 = vrot.slane %v1573, 3
        %v1904 = vsel %vm641, %v1902, %v1903
        %v1905 = vrot.slane %v1574, 3
        %v1906 = vsel %vm641, %v1903, %v1905
        %v1907 = vrot.slane %v1575, 3
        %v1908 = vrot.slane %v1576, 3
        %v1909 = vsel %vm641, %v1907, %v1908
        %v1910 = vrot.slane %v1577, 3
        %v1911 = vsel %vm641, %v1908, %v1910
        %v1912 = vrot.slane %v1578, 3
        %v1913 = vrot.slane %v1579, 3
        %v1914 = vsel %vm641, %v1912, %v1913
        %v1915 = vrot.slane %v1580, 3
        %v1916 = vsel %vm641, %v1913, %v1915
        %v1925 = vmax.f32 %v1889, %v1899
        %v1926 = vmax.f32 %v1890, %v1901
        %v1927 = vmax.f32 %v1891, %v1904
        %v1928 = vmax.f32 %v1892, %v1906
        %v1929 = vmax.f32 %v1893, %v1909
        %v1930 = vmax.f32 %v1894, %v1911
        %v1931 = vmax.f32 %v1895, %v1914
        %v1932 = vmax.f32 %v1896, %v1916
        %v1933 = vrot.slane %v1569, 4
        %v1934 = vrot.slane %v1570, 4
        %v1935 = vsel %vm694, %v1933, %v1934
        %v1936 = vrot.slane %v1571, 4
        %v1937 = vsel %vm694, %v1934, %v1936
        %v1938 = vrot.slane %v1572, 4
        %v1939 = vrot.slane %v1573, 4
        %v1940 = vsel %vm694, %v1938, %v1939
        %v1941 = vrot.slane %v1574, 4
        %v1942 = vsel %vm694, %v1939, %v1941
        %v1943 = vrot.slane %v1575, 4
        %v1944 = vrot.slane %v1576, 4
        %v1945 = vsel %vm694, %v1943, %v1944
        %v1946 = vrot.slane %v1577, 4
        %v1947 = vsel %vm694, %v1944, %v1946
        %v1948 = vrot.slane %v1578, 4
        %v1949 = vrot.slane %v1579, 4
        %v1950 = vsel %vm694, %v1948, %v1949
        %v1951 = vrot.slane %v1580, 4
        %v1952 = vsel %vm694, %v1949, %v1951
        %v1961 = vmax.f32 %v1925, %v1935
        %v1962 = vmax.f32 %v1926, %v1937
        %v1963 = vmax.f32 %v1927, %v1940
        %v1964 = vmax.f32 %v1928, %v1942
        %v1965 = vmax.f32 %v1929, %v1945
        %v1966 = vmax.f32 %v1930, %v1947
        %v1967 = vmax.f32 %v1931, %v1950
        %v1968 = vmax.f32 %v1932, %v1952
        %1977 = vrot.lane.b32.xlu0 %v1961, 127
        %v1978 = vpop.permute.xlu0 %1977
        %1979 = vrot.lane.b32.xlu0 %v1962, 127
        %v1980 = vpop.permute.xlu0 %1979
        %1981 = vrot.lane.b32.xlu0 %v1963, 127
        %v1982 = vpop.permute.xlu0 %1981
        %1983 = vrot.lane.b32.xlu0 %v1964, 127
        %v1984 = vpop.permute.xlu0 %1983
        %1985 = vrot.lane.b32.xlu0 %v1965, 127
        %v1986 = vpop.permute.xlu0 %1985
        %1987 = vrot.lane.b32.xlu0 %v1966, 127
        %v1988 = vpop.permute.xlu0 %1987
        %1989 = vrot.lane.b32.xlu0 %v1967, 127
        %v1990 = vpop.permute.xlu0 %1989
        %1991 = vrot.lane.b32.xlu0 %v1968, 127
        %v1992 = vpop.permute.xlu0 %1991
        %v2001 = vmax.f32 %v1961, %v1978
        %v2002 = vmax.f32 %v1962, %v1980
        %v2003 = vmax.f32 %v1963, %v1982
        %v2004 = vmax.f32 %v1964, %v1984
        %v2005 = vmax.f32 %v1965, %v1986
        %v2006 = vmax.f32 %v1966, %v1988
        %v2007 = vmax.f32 %v1967, %v1990
        %v2008 = vmax.f32 %v1968, %v1992
        %2009 = vrot.lane.b32.xlu0 %v1961, 126
        %v2010 = vpop.permute.xlu0 %2009
        %2011 = vrot.lane.b32.xlu0 %v1962, 126
        %v2012 = vpop.permute.xlu0 %2011
        %2013 = vrot.lane.b32.xlu0 %v1963, 126
        %v2014 = vpop.permute.xlu0 %2013
        %2015 = vrot.lane.b32.xlu0 %v1964, 126
        %v2016 = vpop.permute.xlu0 %2015
        %2017 = vrot.lane.b32.xlu0 %v1965, 126
        %v2018 = vpop.permute.xlu0 %2017
        %2019 = vrot.lane.b32.xlu0 %v1966, 126
        %v2020 = vpop.permute.xlu0 %2019
        %2021 = vrot.lane.b32.xlu0 %v1967, 126
        %v2022 = vpop.permute.xlu0 %2021
        %2023 = vrot.lane.b32.xlu0 %v1968, 126
        %v2024 = vpop.permute.xlu0 %2023
        %v2033 = vmax.f32 %v2001, %v2010
        %v2034 = vmax.f32 %v2002, %v2012
        %v2035 = vmax.f32 %v2003, %v2014
        %v2036 = vmax.f32 %v2004, %v2016
        %v2037 = vmax.f32 %v2005, %v2018
        %v2038 = vmax.f32 %v2006, %v2020
        %v2039 = vmax.f32 %v2007, %v2022
        %v2040 = vmax.f32 %v2008, %v2024
        %2041 = vrot.lane.b32.xlu0 %v1961, 125
        %v2042 = vpop.permute.xlu0 %2041
        %2043 = vrot.lane.b32.xlu0 %v1962, 125
        %v2044 = vpop.permute.xlu0 %2043
        %2045 = vrot.lane.b32.xlu0 %v1963, 125
        %v2046 = vpop.permute.xlu0 %2045
        %2047 = vrot.lane.b32.xlu0 %v1964, 125
        %v2048 = vpop.permute.xlu0 %2047
        %2049 = vrot.lane.b32.xlu0 %v1965, 125
        %v2050 = vpop.permute.xlu0 %2049
        %2051 = vrot.lane.b32.xlu0 %v1966, 125
        %v2052 = vpop.permute.xlu0 %2051
        %2053 = vrot.lane.b32.xlu0 %v1967, 125
        %v2054 = vpop.permute.xlu0 %2053
        %2055 = vrot.lane.b32.xlu0 %v1968, 125
        %v2056 = vpop.permute.xlu0 %2055
        %v2065 = vmax.f32 %v2033, %v2042
        %v2066 = vmax.f32 %v2034, %v2044
        %v2067 = vmax.f32 %v2035, %v2046
        %v2068 = vmax.f32 %v2036, %v2048
        %v2069 = vmax.f32 %v2037, %v2050
        %v2070 = vmax.f32 %v2038, %v2052
        %v2071 = vmax.f32 %v2039, %v2054
        %v2072 = vmax.f32 %v2040, %v2056
        %2073 = vrot.lane.b32.xlu0 %v1961, 124
        %v2074 = vpop.permute.xlu0 %2073
        %2075 = vrot.lane.b32.xlu0 %v1962, 124
        %v2076 = vpop.permute.xlu0 %2075
        %2077 = vrot.lane.b32.xlu0 %v1963, 124
        %v2078 = vpop.permute.xlu0 %2077
        %2079 = vrot.lane.b32.xlu0 %v1964, 124
        %v2080 = vpop.permute.xlu0 %2079
        %2081 = vrot.lane.b32.xlu0 %v1965, 124
        %v2082 = vpop.permute.xlu0 %2081
        %2083 = vrot.lane.b32.xlu0 %v1966, 124
        %v2084 = vpop.permute.xlu0 %2083
        %2085 = vrot.lane.b32.xlu0 %v1967, 124
        %v2086 = vpop.permute.xlu0 %2085
        %2087 = vrot.lane.b32.xlu0 %v1968, 124
        %v2088 = vpop.permute.xlu0 %2087
        %v2097 = vmax.f32 %v2065, %v2074
        %v2098 = vmax.f32 %v2066, %v2076
        %v2099 = vmax.f32 %v2067, %v2078
        %v2100 = vmax.f32 %v2068, %v2080
        %v2101 = vmax.f32 %v2069, %v2082
        %v2102 = vmax.f32 %v2070, %v2084
        %v2103 = vmax.f32 %v2071, %v2086
        %v2104 = vmax.f32 %v2072, %v2088
        %v2105 = vcombine.low %v2097, %v2101
        %v2106 = vcombine.high %v2097, %v2101
        %v2108 = vunpack.c.l.s4 1983009808
        %v2109 = vunpack.c.0.s8 %v2108
        %v2110 = vlaneseq
        %v2111 = vshrl.u32 %v2110, 7
        %v2112 = vsub.s32 %v2109, %v2111
        %v2113 = vrot.slane %v2105, %v2112
        %v2115 = vunpack.c.l.s4 1983009808
        %v2116 = vunpack.c.0.s8 %v2115
        %v2117 = vlaneseq
        %v2118 = vshrl.u32 %v2117, 7
        %v2119 = vsub.s32 %v2116, %v2118
        %v2120 = vrot.slane %v2106, %v2119
        %v2121 = vcombine.low %v2099, %v2103
        %v2122 = vcombine.high %v2099, %v2103
        %v2124 = vunpack.c.l.s4 1983009808
        %v2125 = vunpack.c.0.s8 %v2124
        %v2126 = vlaneseq
        %v2127 = vshrl.u32 %v2126, 7
        %v2128 = vsub.s32 %v2125, %v2127
        %v2129 = vrot.slane %v2121, %v2128
        %v2131 = vunpack.c.l.s4 1983009808
        %v2132 = vunpack.c.0.s8 %v2131
        %v2133 = vlaneseq
        %v2134 = vshrl.u32 %v2133, 7
        %v2135 = vsub.s32 %v2132, %v2134
        %v2136 = vrot.slane %v2122, %v2135
        %v2137 = vcombine.low %v2113, %v2129
        %v2138 = vcombine.high %v2113, %v2129
        %v2140 = vunpack.c.l.s4 1934713408
        %v2141 = vunpack.c.0.s8 %v2140
        %v2142 = vlaneseq
        %v2143 = vshrl.u32 %v2142, 7
        %v2144 = vsub.s32 %v2141, %v2143
        %v2145 = vrot.slane %v2137, %v2144
        %v2147 = vunpack.c.l.s4 1934713408
        %v2148 = vunpack.c.0.s8 %v2147
        %v2149 = vlaneseq
        %v2150 = vshrl.u32 %v2149, 7
        %v2151 = vsub.s32 %v2148, %v2150
        %v2152 = vrot.slane %v2138, %v2151
        %v2153 = vcombine.low %v2120, %v2136
        %v2154 = vcombine.high %v2120, %v2136
        %v2156 = vunpack.c.l.s4 1934713408
        %v2157 = vunpack.c.0.s8 %v2156
        %v2158 = vlaneseq
        %v2159 = vshrl.u32 %v2158, 7
        %v2160 = vsub.s32 %v2157, %v2159
        %v2161 = vrot.slane %v2153, %v2160
        %v2163 = vunpack.c.l.s4 1934713408
        %v2164 = vunpack.c.0.s8 %v2163
        %v2165 = vlaneseq
        %v2166 = vshrl.u32 %v2165, 7
        %v2167 = vsub.s32 %v2164, %v2166
        %v2168 = vrot.slane %v2154, %v2167
        %v2169 = vcombine.high %v2145, 0.0
        %v2170 = vcombine.high %v2152, 0.0
        %v2171 = vcombine.high %v2161, 0.0
        %v2172 = vcombine.high %v2168, 0.0
        %v2173 = vcombine.low %v2098, %v2102
        %v2174 = vcombine.high %v2098, %v2102
        %v2176 = vunpack.c.l.s4 1983009808
        %v2177 = vunpack.c.0.s8 %v2176
        %v2178 = vlaneseq
        %v2179 = vshrl.u32 %v2178, 7
        %v2180 = vsub.s32 %v2177, %v2179
        %v2181 = vrot.slane %v2173, %v2180
        %v2183 = vunpack.c.l.s4 1983009808
        %v2184 = vunpack.c.0.s8 %v2183
        %v2185 = vlaneseq
        %v2186 = vshrl.u32 %v2185, 7
        %v2187 = vsub.s32 %v2184, %v2186
        %v2188 = vrot.slane %v2174, %v2187
        %v2189 = vcombine.low %v2100, %v2104
        %v2190 = vcombine.high %v2100, %v2104
        %v2192 = vunpack.c.l.s4 1983009808
        %v2193 = vunpack.c.0.s8 %v2192
        %v2194 = vlaneseq
        %v2195 = vshrl.u32 %v2194, 7
        %v2196 = vsub.s32 %v2193, %v2195
        %v2197 = vrot.slane %v2189, %v2196
        %v2199 = vunpack.c.l.s4 1983009808
        %v2200 = vunpack.c.0.s8 %v2199
        %v2201 = vlaneseq
        %v2202 = vshrl.u32 %v2201, 7
        %v2203 = vsub.s32 %v2200, %v2202
        %v2204 = vrot.slane %v2190, %v2203
        %v2205 = vcombine.low %v2181, %v2197
        %v2206 = vcombine.high %v2181, %v2197
        %v2208 = vunpack.c.l.s4 1934713408
        %v2209 = vunpack.c.0.s8 %v2208
        %v2210 = vlaneseq
        %v2211 = vshrl.u32 %v2210, 7
        %v2212 = vsub.s32 %v2209, %v2211
        %v2213 = vrot.slane %v2205, %v2212
        %v2215 = vunpack.c.l.s4 1934713408
        %v2216 = vunpack.c.0.s8 %v2215
        %v2217 = vlaneseq
        %v2218 = vshrl.u32 %v2217, 7
        %v2219 = vsub.s32 %v2216, %v2218
        %v2220 = vrot.slane %v2206, %v2219
        %v2221 = vcombine.low %v2188, %v2204
        %v2222 = vcombine.high %v2188, %v2204
        %v2224 = vunpack.c.l.s4 1934713408
        %v2225 = vunpack.c.0.s8 %v2224
        %v2226 = vlaneseq
        %v2227 = vshrl.u32 %v2226, 7
        %v2228 = vsub.s32 %v2225, %v2227
        %v2229 = vrot.slane %v2221, %v2228
        %v2231 = vunpack.c.l.s4 1934713408
        %v2232 = vunpack.c.0.s8 %v2231
        %v2233 = vlaneseq
        %v2234 = vshrl.u32 %v2233, 7
        %v2235 = vsub.s32 %v2232, %v2234
        %v2236 = vrot.slane %v2222, %v2235
        %v2237 = vcombine.high %v2213, 0.0
        %v2238 = vcombine.high %v2220, 0.0
        %v2239 = vcombine.high %v2229, 0.0
        %v2240 = vcombine.high %v2236, 0.0
        %2242 = vrot.lane.b32.xlu0 %v2169, 16
        %v2243 = vpop.permute.xlu0 %2242
        %2246 = vrot.lane.b32.xlu0 %v2152, 32
        %v2247 = vpop.permute.xlu0 %2246
        %2250 = vrot.lane.b32.xlu0 %v2170, 48
        %v2251 = vpop.permute.xlu0 %2250
        %2254 = vrot.lane.b32.xlu0 %v2161, 64
        %v2255 = vpop.permute.xlu0 %2254
        %2258 = vrot.lane.b32.xlu0 %v2171, 80
        %v2259 = vpop.permute.xlu0 %2258
        %2262 = vrot.lane.b32.xlu0 %v2168, 96
        %v2263 = vpop.permute.xlu0 %2262
        %2266 = vrot.lane.b32.xlu0 %v2172, 112
        %v2267 = vpop.permute.xlu0 %2266
        %2270 = vrot.lane.b32.xlu0 %v2237, 16
        %v2271 = vpop.permute.xlu0 %2270
        %2274 = vrot.lane.b32.xlu0 %v2220, 32
        %v2275 = vpop.permute.xlu0 %2274
        %2278 = vrot.lane.b32.xlu0 %v2238, 48
        %v2279 = vpop.permute.xlu0 %2278
        %2282 = vrot.lane.b32.xlu0 %v2229, 64
        %v2283 = vpop.permute.xlu0 %2282
        %2286 = vrot.lane.b32.xlu0 %v2239, 80
        %v2287 = vpop.permute.xlu0 %2286
        %2290 = vrot.lane.b32.xlu0 %v2236, 96
        %v2291 = vpop.permute.xlu0 %2290
        %2294 = vrot.lane.b32.xlu0 %v2240, 112
        %v2295 = vpop.permute.xlu0 %2294
        %v2297 = vsel %vm496, %v2145, %v2243
        %v2298 = vsel %vm498, %v2297, %v2247
        %v2299 = vsel %vm500, %v2298, %v2251
        %v2300 = vsel %vm502, %v2299, %v2255
        %v2301 = vsel %vm504, %v2300, %v2259
        %v2302 = vsel %vm506, %v2301, %v2263
        %v2303 = vsel %vm508, %v2302, %v2267
        %v2304 = vsel %vm496, %v2213, %v2271
        %v2305 = vsel %vm498, %v2304, %v2275
        %v2306 = vsel %vm500, %v2305, %v2279
        %v2307 = vsel %vm502, %v2306, %v2283
        %v2308 = vsel %vm504, %v2307, %v2287
        %v2309 = vsel %vm506, %v2308, %v2291
        %v2310 = vsel %vm508, %v2309, %v2295
        %v2313 = vrot.slane %v2303, 4
        %v2314 = vrot.slane %v2310, 4
        %2317 = vst [vmem:[#allocation3 + $0x10] sm:$0xf0] %v2313
        %2318 = vst [vmem:[#allocation3 + $0x18] sm:$0xf0] %v2314
        %v2319 = vld [vmem:[%s1] sm:$0xff]
        %v2320 = vld [vmem:[#allocation3] sm:$0xff]
        %v2321 = vld [vmem:[#allocation3 + $0x8] sm:$0xff]
        %v2322 = vld [vmem:[#allocation3 + $0x10] sm:$0xff]
        %v2323 = vld [vmem:[#allocation3 + $0x18] sm:$0xff]
        %v2325 = vsel %vm496, %v2319, 0
        %2327 = vmatprep.subr.mxu0 %v2321
        %2328 = vmatpush1.msra.mxu0 %v2320
        %2329 = vmatprep.subr.mxu0 %v2323
        %2330 = vmatpush1.msra.mxu0 %v2322
        %2331 = vmatprep.subr.mxu0 0.0
        %2332 = vmatpush1.msra.mxu0 0.0
        %2333 = vmatprep.subr.mxu0 0.0
        %2334 = vmatpush1.msra.mxu0 0.0
        %2335 = vmatprep.subr.mxu0 0.0
        %2336 = vmatpush1.msra.mxu0 0.0
        %2337 = vmatprep.subr.mxu0 0.0
        %2338 = vmatpush1.msra.mxu0 0.0
        %2339 = vmatprep.subr.mxu0 0.0
        %2340 = vmatpush1.msra.mxu0 0.0
        %2341 = vmatprep.subr.mxu0 0.0
        %2342 = vmatpush1.msra.mxu0 0.0
        %2343 = vmatprep.subr.mxu0 0.0
        %2344 = vmatpush1.msra.mxu0 0.0
        %2345 = vmatprep.subr.mxu0 0.0
        %2346 = vmatpush1.msra.mxu0 0.0
        %2347 = vmatprep.subr.mxu0 0.0
        %2348 = vmatpush1.msra.mxu0 0.0
        %2349 = vmatprep.subr.mxu0 0.0
        %2350 = vmatpush1.msra.mxu0 0.0
        %2351 = vmatprep.subr.mxu0 0.0
        %2352 = vmatpush1.msra.mxu0 0.0
        %2353 = vmatprep.subr.mxu0 0.0
        %2354 = vmatpush1.msra.mxu0 0.0
        %2355 = vmatprep.subr.mxu0 0.0
        %2356 = vmatpush1.msra.mxu0 0.0
        %2357 = vmatprep.subr.mxu0 0.0
        %2358 = vmatpush1.msra.mxu0 0.0
        %2359 = vmatprep.subr.mxu0 0.0
        %2360 = vmatpush1.msra.mxu0 0.0
        %2361 = vmatprep.subr.mxu0 0.0
        %2362 = vmatpush1.msra.mxu0 0.0
        %2363 = vmatprep.subr.mxu0 0.0
        %2364 = vmatpush1.msra.mxu0 0.0
        %2365 = vmatprep.subr.mxu0 0.0
        %2366 = vmatpush1.msra.mxu0 0.0
        %2367 = vmatprep.subr.mxu0 0.0
        %2368 = vmatpush1.msra.mxu0 0.0
        %2369 = vmatprep.subr.mxu0 0.0
        %2370 = vmatpush1.msra.mxu0 0.0
        %2371 = vmatprep.subr.mxu0 0.0
        %2372 = vmatpush1.msra.mxu0 0.0
        %2373 = vmatprep.subr.mxu0 0.0
        %2374 = vmatpush1.msra.mxu0 0.0
        %2375 = vmatprep.subr.mxu0 0.0
        %2376 = vmatpush1.msra.mxu0 0.0
        %2377 = vmatprep.subr.mxu0 0.0
        %2378 = vmatpush1.msra.mxu0 0.0
        %2379 = vmatprep.subr.mxu0 0.0
        %2380 = vmatpush1.msra.mxu0 0.0
        %2381 = vmatprep.subr.mxu0 0.0
        %2382 = vmatpush1.msra.mxu0 0.0
        %2383 = vmatprep.subr.mxu0 0.0
        %2384 = vmatpush1.msra.mxu0 0.0
        %2385 = vmatprep.subr.mxu0 0.0
        %2386 = vmatpush1.msra.mxu0 0.0
        %2387 = vmatprep.subr.mxu0 0.0
        %2388 = vmatpush1.msra.mxu0 0.0
        %2389 = vmatprep.subr.mxu0 0.0
        %2390 = vmatpush1.msra.mxu0 0.0
        %2391 = vmatprep.mubr.f32.mxu0 0.0
        %2392 = vmatmul.mubr.f32.gmra.mrb[0].mxu0 %v2325
        %v2393 = vpop.f32.mrb[0].mxu0
        %v2394 = vadd.f32 0.0, %v2393
        %v2395 = vpop.f32.mrb[0].mxu0
        %v2396 = vadd.f32 0.0, %v2395
        %2397 = vdwg.mxu0
        %v2398 = vld [vmem:[%s205] sm:$0xff]
        %v2399 = vld [vmem:[%s205 + $0x8] sm:$0xff]
        %v2400 = vadd.f32 %v2398, %v2394
        %v2401 = vadd.f32 %v2399, %v2396
        %2402 = vst [vmem:[%s205] sm:$0xff] %v2400
        %2403 = vst [vmem:[%s205 + $0x8] sm:$0xff] %v2401
        // Predicated region
        $region41: #{tpu_custom_call.1} parent=31 // pred_check
          %p2404 = pneg %p207
        $region42: #{tpu_custom_call.1} parent=31 // pred_check_branch
          %2406 = sbr.rel (%p2404) target = $region44
        $region43: #{tpu_custom_call.1} parent=31 // pred_region
          %v2407 = vld [vmem:[%s205] sm:$0xff]
          %v2408 = vld [vmem:[%s205 + $0x8] sm:$0xff]
          %v2409 = vld [vmem:[%s2] sm:$0xff]
          %2411 = vset.pattern.permute.xlu0 0
          %2412 = vperm.xlu0 %2411, %v2409
          %v2413 = vpop.permute.xlu0 %2412
          %v2415 = vadd.f32 %v2407, %v2413
          %v2416 = vadd.f32 %v2408, %v2413
          %v2417 = vxor.u32 %v2415, 2147483648
          %v2418 = vxor.u32 %v2416, 2147483648
          %v2419 = vmul.f32 %v2417, 1.442695
          %v2420 = vpow.pop %v2419
          %v2421 = vmul.f32 %v2418, 1.442695
          %v2422 = vpow.pop %v2421
          %v2423 = vadd.f32 %v2420, 1.0
          %v2424 = vadd.f32 %v2422, 1.0
          %v2425 = vrcp.pop %v2423
          %v2426 = vmul.f32 1.0, %v2425
          %v2427 = vrcp.pop %v2424
          %v2428 = vmul.f32 1.0, %v2427
          %v2429 = vmul.f32 %v2415, %v2426
          %v2430 = vmul.f32 %v2416, %v2428
          %2431 = vst [vmem:[%s205] sm:$0xff] %v2429
          %2432 = vst [vmem:[%s205 + $0x8] sm:$0xff] %v2430
        $region44: #{tpu_custom_call.1} parent=31 // pred_fallthru
          _
        %s2433 = sand.u32 %s110, 1
        %s2434 = scalar_lea.sflag [#allocation6], %s2433
        %s2435 = sand.u32 %s110, 1
        %s2436 = smul.addr %s2435, 16
        %s2437 = scalar_lea.vmem [#allocation7], %s2436
        // Predicated region
        $region45: #{tpu_custom_call.1} parent=31 // pred_check
          %p2438 = pneg %p120
        $region46: #{tpu_custom_call.1} parent=31 // pred_check_branch
          %2440 = sbr.rel (%p2438) target = $region48
        $region47: #{tpu_custom_call.1} parent=31 // pred_region
          %s2442 = ssub.s32 256, 256
          %2443 = vsyncadd %s2434, %s2442
          %s2444 = smul.addr %s24, 2
          %s2445 = smul.addr %s2444, 128
          %s2446 = scalar_lea.hbm %s3, %s2445
          %s2448 = sshll.u32 %s2437, 4
          %s2449 = int_to_ptr.vmem [resolvable:$true] %s2448
          %2451 = dma.vmem_to_hbm [thread:$0]  %s2449, 256, %s2446, %s2434
        $region48: #{tpu_custom_call.1} parent=31 // pred_fallthru
          _
      $region32: #{tpu_custom_call.1} parent=5 // pred_fallthru
        _
      %p2452 = scmp.le.s32.totalorder 2, %s15
      // Predicated region
      $region49: #{tpu_custom_call.1} parent=5 // pred_check
        %p2453 = pneg %p2452
      $region50: #{tpu_custom_call.1} parent=5 // pred_check_branch
        %2455 = sbr.rel (%p2453) target = $region52
      $region51: #{tpu_custom_call.1} parent=5 // pred_region
        %s2456 = ssub.s32 %s15, 2
        // Predicated region
        $region53: #{tpu_custom_call.1} parent=51 // pred_check
          %p2457 = pneg %p126
        $region54: #{tpu_custom_call.1} parent=51 // pred_check_branch
          %2459 = sbr.rel (%p2457) target = $region56
        $region55: #{tpu_custom_call.1} parent=51 // pred_region
          %s2460 = sand.u32 %s111, 1
          %s2461 = scalar_lea.sflag [#allocation6], %s2460
          %s2462 = sand.u32 %s111, 1
          %s2463 = smul.addr %s2462, 16
          %s2464 = scalar_lea.vmem [#allocation7], %s2463
          %2465 = dma.done %s2461, 256
        $region56: #{tpu_custom_call.1} parent=51 // pred_fallthru
          _
      $region52: #{tpu_custom_call.1} parent=5 // pred_fallthru
        _
    $region6: #{tpu_custom_call.1} parent=1 // loop_footer
      %s19 = sadd.s32 1, %s15
    $region7: #{tpu_custom_call.1} parent=1 // loop_footer_branch
      %14 = sbr.rel target = $region3
    $region8: #{tpu_custom_call.1} parent=1 // loop_exit
      _
    %2466 = vsyncpa [#allocation5], 1
    %s2467 = scalar_lea.sflag [#allocation5], 1
    %2468 = vsyncpa %s2467, 1
    %2469 = vsyncpa [#allocation6], 1
    %s2470 = scalar_lea.sflag [#allocation6], 1
    %2471 = vsyncpa %s2470, 1

</llo_original>
